<compile_context>
chip_gen: v6e
topology: v6e:2x2x1
jax: 0.10.0
libtpu: 0.0.40
codegen_flags: <defaults>
</compile_context>

<pallas_src>
import functools
import math

import jax
import jax.numpy as jnp
from jax import lax
from jax.experimental import pallas as pl
from jax.experimental.pallas import tpu as pltpu

F32 = jnp.float32
BF16 = jnp.bfloat16
# 48 MiB is safe on v7x (64 MiB physical per TC); v5e/v6e (128 MiB) could go higher.
_VMEM_LIMIT = 48 * 1024 * 1024

_VMEM_SPEC = pl.BlockSpec(memory_space=pltpu.MemorySpace.VMEM)


def _pick_tile(m, target=512):
    """Largest row-tile <= target that divides m and is a multiple of 8 (else whole)."""
    if m <= target:
        return m
    for t in range(target, 7, -8):
        if m % t == 0:
            return t
    return m


# ----------------------------- Pallas kernels ------------------------------

def _layernorm_kernel(x_ref, g_ref, b_ref, o_ref):
    x = x_ref[...].astype(F32)
    mu = jnp.mean(x, axis=-1, keepdims=True)
    var = jnp.mean((x - mu) ** 2, axis=-1, keepdims=True)
    y = (x - mu) * lax.rsqrt(var + 1e-12) * g_ref[...] + b_ref[...]
    o_ref[...] = y.astype(o_ref.dtype)


def _attn_block_kernel(x_ref, bias_ref, wqkv_ref, bqkv_ref, wo_ref, bo_ref,
                       g_ref, b_ref, o_ref, *, num_heads, head_dim, scale, q_tile):
    # x: [1, S, H] bf16   bias: [1, 1, S] f32 (additive mask, broadcast in-kernel)
    # wqkv: [H, 3H] bf16  wo: [H, H] bf16    biases / LN params: f32
    S = x_ref.shape[1]
    H = num_heads * head_dim
    x = x_ref[0]                                                      # [S, H] bf16

    # Fused QKV projection: one MXU pass over x; f32 accumulate + bias, then a
    # single f32->bf16 cast (no per-head casts).
    qkv = jnp.dot(x, wqkv_ref[...], preferred_element_type=F32) + bqkv_ref[...]
    qkv = qkv.astype(BF16)                                            # [S, 3H] bf16

    # Slice Q/K/V once at H boundaries (lane-aligned at phobert scale) and go
    # head-major so scores/ctx are head-batched dot_generals.
    q_all = jnp.swapaxes(qkv[:, :H].reshape(S, num_heads, head_dim), 0, 1)       # [nH,S,dH]
    k_all = jnp.swapaxes(qkv[:, H:2 * H].reshape(S, num_heads, head_dim), 0, 1)  # [nH,S,dH]
    v_all = jnp.swapaxes(qkv[:, 2 * H:].reshape(S, num_heads, head_dim), 0, 1)   # [nH,S,dH]

    bias = bias_ref[0]                                                # [1, S] f32
    wo = wo_ref[...]                                                  # [H, H] bf16
    bo = bo_ref[...]                                                  # [1, H] f32
    g = g_ref[...]
    b = b_ref[...]

    n_q = S // q_tile
    for qi in range(n_q):        # static unroll: bounds live [tq, S] score tile
        lo = qi * q_tile
        q = q_all[:, lo:lo + q_tile, :]                               # [nH, tq, dH]

        # scores: batch over heads, contract head_dim -> [nH, tq, S]
        s = lax.dot_general(q, k_all, (((2,), (2,)), ((0,), (0,))),
                            preferred_element_type=F32) * scale + bias
        m = jnp.max(s, axis=-1, keepdims=True)
        p = jnp.exp(s - m)
        p = p * pl.reciprocal(jnp.sum(p, axis=-1, keepdims=True))     # exact softmax

        # ctx: [nH, tq, dH]
        ctx = lax.dot_general(p.astype(BF16), v_all, (((2,), (1,)), ((0,), (0,))),
                              preferred_element_type=F32)
        # Concatenate heads along lanes -> [tq, H]; ONE full-K output projection.
        ctx = jnp.swapaxes(ctx, 0, 1).reshape(q_tile, H).astype(BF16)
        proj = jnp.dot(ctx, wo, preferred_element_type=F32) + bo      # [tq, H] f32

        # residual + post-LN (f32 stats), stored per q tile
        y = proj + x[lo:lo + q_tile, :].astype(F32)
        mu = jnp.mean(y, axis=-1, keepdims=True)
        var = jnp.mean((y - mu) ** 2, axis=-1, keepdims=True)
        o_ref[0, lo:lo + q_tile, :] = (
            (y - mu) * lax.rsqrt(var + 1e-12) * g + b).astype(o_ref.dtype)


def _ffn_block_kernel(h_ref, wi_ref, bi_ref, wf_ref, bf_ref, g_ref, b_ref, o_ref):
    # h: [tm, H] bf16, wi: [H, I] bf16, wf: [I, H] bf16
    h_bf = h_ref[...]
    inter = jnp.dot(h_bf, wi_ref[...], preferred_element_type=F32) + bi_ref[...]
    # TODO(synk): BERT uses exact erf-gelu; tanh approximation used here because
    # erf lowering support inside Mosaic is not guaranteed in this environment.
    inter = jax.nn.gelu(inter, approximate=True)
    ffn = jnp.dot(inter.astype(BF16), wf_ref[...],
                  preferred_element_type=F32) + bf_ref[...]
    y = ffn + h_bf.astype(F32)
    mu = jnp.mean(y, axis=-1, keepdims=True)
    var = jnp.mean((y - mu) ** 2, axis=-1, keepdims=True)
    o_ref[...] = ((y - mu) * lax.rsqrt(var + 1e-12) * g_ref[...]
                  + b_ref[...]).astype(o_ref.dtype)


def _head_kernel(cls_ref, pw_ref, pb_ref, fw_ref, fb_ref, o_ref):
    # pooler: tanh(dense(CLS)); dropout(p=0.3) is identity at inference;
    # classifier: dense (lane-padded to 128 at init) + ReLU.
    pooled = jnp.tanh(jnp.dot(cls_ref[...], pw_ref[...],
                              preferred_element_type=F32) + pb_ref[...])
    # TODO(synk): training-mode dropout (pltpu.prng_random_bits mask) not applied.
    logits = jnp.dot(pooled.astype(BF16), fw_ref[...],
                     preferred_element_type=F32) + fb_ref[...]
    o_ref[...] = jnp.maximum(logits, 0.0)


# ----------------------------- kernel wrappers ------------------------------

def pallas_layernorm(x, g, b):
    M, H = x.shape
    tm = _pick_tile(M)
    return pl.pallas_call(
        _layernorm_kernel,
        out_shape=jax.ShapeDtypeStruct((M, H), BF16),
        grid_spec=pltpu.PrefetchScalarGridSpec(
            num_scalar_prefetch=0,
            grid=(M // tm,),
            in_specs=[
                pl.BlockSpec((tm, H), lambda i: (i, 0)),
                pl.BlockSpec((1, H), lambda i: (0, 0)),
                pl.BlockSpec((1, H), lambda i: (0, 0)),
            ],
            out_specs=pl.BlockSpec((tm, H), lambda i: (i, 0)),
        ),
        compiler_params=pltpu.CompilerParams(
            dimension_semantics=("parallel",), vmem_limit_bytes=_VMEM_LIMIT),
    )(x, g.reshape(1, H), b.reshape(1, H))


def attention_block(x, bias, lp, num_heads):
    B, S, H = x.shape
    dH = H // num_heads
    q_tile = _pick_tile(S, target=256)
    kern = functools.partial(_attn_block_kernel, num_heads=num_heads, head_dim=dH,
                             scale=1.0 / math.sqrt(dH), q_tile=q_tile)
    return pl.pallas_call(
        kern,
        out_shape=jax.ShapeDtypeStruct((B, S, H), BF16),
        grid_spec=pltpu.PrefetchScalarGridSpec(
            num_scalar_prefetch=0,
            grid=(B,),
            in_specs=[
                pl.BlockSpec((1, S, H), lambda b: (b, 0, 0)),     # x (bf16)
                pl.BlockSpec((1, 1, S), lambda b: (b, 0, 0)),     # additive mask row
                pl.BlockSpec((H, 3 * H), lambda b: (0, 0)),       # w_qkv (resident)
                pl.BlockSpec((1, 3 * H), lambda b: (0, 0)),       # b_qkv
                pl.BlockSpec((H, H), lambda b: (0, 0)),           # w_o
                pl.BlockSpec((1, H), lambda b: (0, 0)),           # b_o
                pl.BlockSpec((1, H), lambda b: (0, 0)),           # ln1 gamma
                pl.BlockSpec((1, H), lambda b: (0, 0)),           # ln1 beta
            ],
            out_specs=pl.BlockSpec((1, S, H), lambda b: (b, 0, 0)),
        ),
        compiler_params=pltpu.CompilerParams(
            dimension_semantics=("parallel",), vmem_limit_bytes=_VMEM_LIMIT),
    )(x, bias, lp["w_qkv"], lp["b_qkv"], lp["w_o"], lp["b_o"],
      lp["ln1_g"], lp["ln1_b"])


def ffn_block(h, lp):
    M, H = h.shape
    I = lp["w_i"].shape[1]
    tm = _pick_tile(M)
    return pl.pallas_call(
        _ffn_block_kernel,
        out_shape=jax.ShapeDtypeStruct((M, H), BF16),
        grid_spec=pltpu.PrefetchScalarGridSpec(
            num_scalar_prefetch=0,
            grid=(M // tm,),
            in_specs=[
                pl.BlockSpec((tm, H), lambda i: (i, 0)),
                pl.BlockSpec((H, I), lambda i: (0, 0)),
                pl.BlockSpec((1, I), lambda i: (0, 0)),
                pl.BlockSpec((I, H), lambda i: (0, 0)),
                pl.BlockSpec((1, H), lambda i: (0, 0)),
                pl.BlockSpec((1, H), lambda i: (0, 0)),
                pl.BlockSpec((1, H), lambda i: (0, 0)),
            ],
            out_specs=pl.BlockSpec((tm, H), lambda i: (i, 0)),
        ),
        compiler_params=pltpu.CompilerParams(
            dimension_semantics=("parallel",), vmem_limit_bytes=_VMEM_LIMIT),
    )(h, lp["w_i"], lp["b_i"], lp["w_f"], lp["b_f"], lp["ln2_g"], lp["ln2_b"])


def classifier_head(cls, pool_w, pool_b, fc_w_pad, fc_b_pad, n_classes):
    # fc weights were lane-padded to 128 once at init; no per-forward padding copies.
    B, _ = cls.shape
    Np = fc_w_pad.shape[1]
    out = pl.pallas_call(
        _head_kernel,
        out_shape=jax.ShapeDtypeStruct((B, Np), F32),
        in_specs=[_VMEM_SPEC] * 5,
        out_specs=_VMEM_SPEC,
        compiler_params=pltpu.CompilerParams(vmem_limit_bytes=_VMEM_LIMIT),
    )(cls, pool_w, pool_b, fc_w_pad, fc_b_pad)
    return out[:, :n_classes]


# ----------------------------- model definition ----------------------------

CFG = dict(
    vocab_size=100,
    hidden=32,
    num_heads=4,
    num_layers=2,
    intermediate=64,
    max_pos=16,
    n_classes=3,
)


def init_params(key, cfg):
    H, I, V, P = cfg["hidden"], cfg["intermediate"], cfg["vocab_size"], cfg["max_pos"]
    nC = cfg["n_classes"]
    keys = iter(jax.random.split(key, 64))

    def nrm(shape, std=0.02, dtype=BF16):
        return (std * jax.random.normal(next(keys), shape)).astype(dtype)

    # classifier head padded to 128 lanes once at init (lane-dense kernel output)
    fc_w = nrm((H, nC), std=0.02)
    fc_b = jax.random.normal(next(keys), (nC,)).astype(F32)   # N(0, 1) bias
    fc_w_pad = jnp.zeros((H, 128), BF16).at[:, :nC].set(fc_w)
    fc_b_pad = jnp.zeros((1, 128), F32).at[0, :nC].set(fc_b)

    params = {
        "word_emb": nrm((V, H), dtype=F32),
        "pos_emb": nrm((P, H), dtype=F32),
        "type_emb": nrm((1, H), dtype=F32),
        "emb_ln_g": jnp.ones((H,), F32),
        "emb_ln_b": jnp.zeros((H,), F32),
        "layers": [],
        "pool_w": nrm((H, H)),                               # bf16 for MXU
        "pool_b": jnp.zeros((1, H), F32),
        "fc_w_pad": fc_w_pad,
        "fc_b_pad": fc_b_pad,
    }
    for _ in range(cfg["num_layers"]):
        params["layers"].append({
            "w_qkv": nrm((H, 3 * H)),                        # fused Q|K|V weight
            "b_qkv": jnp.zeros((1, 3 * H), F32),
            "w_o": nrm((H, H)),
            "b_o": jnp.zeros((1, H), F32),
            "ln1_g": jnp.ones((1, H), F32), "ln1_b": jnp.zeros((1, H), F32),
            "w_i": nrm((H, I)), "b_i": jnp.zeros((1, I), F32),
            "w_f": nrm((I, H)), "b_f": jnp.zeros((1, H), F32),
            "ln2_g": jnp.ones((1, H), F32), "ln2_b": jnp.zeros((1, H), F32),
        })
    return params


def sensitive_classifier_forward(params, input_ids, attention_mask, *, cfg):
    B, S = input_ids.shape
    H = cfg["hidden"]
    nH = cfg["num_heads"]

    # ---- embeddings (gather/add are XLA glue; LN is a Pallas kernel) ----
    # TODO(synk): phobert/RoBERTa position ids start at padding_idx+1; the synthetic
    # stand-in indexes positions from 0.
    word = jnp.take(params["word_emb"], input_ids, axis=0)            # [B, S, H]
    pos = params["pos_emb"][:S][None, :, :]
    typ = params["type_emb"][0][None, None, :]
    emb = (word + pos + typ).reshape(B * S, H)
    h = pallas_layernorm(emb, params["emb_ln_g"], params["emb_ln_b"])  # bf16
    h = h.reshape(B, S, H)

    # additive attention bias kept as [B, 1, S]; broadcast happens inside the kernel
    bias = ((1.0 - attention_mask.astype(F32)) * -10000.0).reshape(B, 1, S)

    # ---- transformer stack: 2 fused Pallas kernels per layer, bf16 activations ----
    for lp in params["layers"]:
        h = attention_block(h, bias, lp, nH)                          # [B, S, H] bf16
        h = ffn_block(h.reshape(B * S, H), lp).reshape(B, S, H)       # bf16

    # ---- pooler + dropout(eval) + classifier + ReLU (one fused kernel) ----
    cls = h[:, 0, :]                                                  # [B, H] bf16
    logits = classifier_head(cls, params["pool_w"], params["pool_b"],
                             params["fc_w_pad"], params["fc_b_pad"],
                             cfg["n_classes"])
    return logits                                                     # [B, n_classes]


# ----------------------------------- main -----------------------------------

if __name__ == "__main__":
    cfg = CFG
    key = jax.random.PRNGKey(0)
    pkey, ikey = jax.random.split(key)

    params = init_params(pkey, cfg)

    B, S = 2, 8
    input_ids = jax.random.randint(ikey, (B, S), 0, cfg["vocab_size"], dtype=jnp.int32)
    attention_mask = jnp.ones((B, S), dtype=jnp.int32)

    fwd = jax.jit(functools.partial(sensitive_classifier_forward, cfg=cfg))
    out = fwd(params, input_ids, attention_mask)
    out = jax.block_until_ready(out)

    assert out.shape == (B, cfg["n_classes"])
    assert bool(jnp.all(out >= 0.0))  # ReLU output
    assert bool(jnp.all(jnp.isfinite(out)))
    print("KERNEL_OK")
</pallas_src>

<mosaic_0001>
module attributes {stable_mosaic.version = 11 : i64} {
  func.func @_layernorm_kernel(%arg0: i32, %arg1: memref<16x32xf32, #tpu.memory_space<vmem>>, %arg2: memref<1x32xf32, #tpu.memory_space<vmem>>, %arg3: memref<1x32xf32, #tpu.memory_space<vmem>>, %arg4: memref<16x32xbf16, #tpu.memory_space<vmem>>) attributes {dimension_semantics = [#tpu.dimension_semantics<parallel>], iteration_bounds = array<i64: 1>, scalar_prefetch = 0 : i64, scratch_operands = 0 : i64, tpu.core_type = #tpu.core_type<tc>, window_params = [{transform_indices = @transform_0, window_bounds = array<i64: 16, 32>}, {pipeline_mode = #tpu.pipeline_mode<synchronous>, transform_indices = @transform_1, window_bounds = array<i64: 1, 32>}, {pipeline_mode = #tpu.pipeline_mode<synchronous>, transform_indices = @transform_2, window_bounds = array<i64: 1, 32>}, {transform_indices = @transform_3, window_bounds = array<i64: 16, 32>}]} {
    %c0 = arith.constant 0 : index
    %c0_0 = arith.constant 0 : index
    %0 = vector.load %arg1[%c0, %c0_0] : memref<16x32xf32, #tpu.memory_space<vmem>>, vector<16x32xf32>
    %cst = arith.constant dense<0.000000e+00> : vector<16xf32>
    %1 = vector.multi_reduction <add>, %0, %cst [1] : vector<16x32xf32> to vector<16xf32>
    %2 = vector.shape_cast %1 : vector<16xf32> to vector<16x1xf32>
    %cst_1 = arith.constant 3.200000e+01 : f32
    %3 = vector.broadcast %cst_1 : f32 to vector<16x1xf32>
    %4 = arith.divf %2, %3 : vector<16x1xf32>
    %5 = vector.broadcast %4 : vector<16x1xf32> to vector<16x32xf32>
    %6 = arith.subf %0, %5 : vector<16x32xf32>
    %7 = arith.mulf %6, %6 : vector<16x32xf32>
    %cst_2 = arith.constant dense<0.000000e+00> : vector<16xf32>
    %8 = vector.multi_reduction <add>, %7, %cst_2 [1] : vector<16x32xf32> to vector<16xf32>
    %9 = vector.shape_cast %8 : vector<16xf32> to vector<16x1xf32>
    %cst_3 = arith.constant 3.200000e+01 : f32
    %10 = vector.broadcast %cst_3 : f32 to vector<16x1xf32>
    %11 = arith.divf %9, %10 : vector<16x1xf32>
    %12 = vector.broadcast %4 : vector<16x1xf32> to vector<16x32xf32>
    %13 = arith.subf %0, %12 : vector<16x32xf32>
    %cst_4 = arith.constant 9.99999996E-13 : f32
    %14 = vector.broadcast %cst_4 : f32 to vector<16x1xf32>
    %15 = arith.addf %11, %14 : vector<16x1xf32>
    %16 = math.rsqrt %15 : vector<16x1xf32>
    %17 = vector.broadcast %16 : vector<16x1xf32> to vector<16x32xf32>
    %18 = arith.mulf %13, %17 : vector<16x32xf32>
    %c0_5 = arith.constant 0 : index
    %c0_6 = arith.constant 0 : index
    %19 = vector.load %arg2[%c0_5, %c0_6] : memref<1x32xf32, #tpu.memory_space<vmem>>, vector<1x32xf32>
    %20 = vector.broadcast %19 : vector<1x32xf32> to vector<16x32xf32>
    %21 = arith.mulf %18, %20 : vector<16x32xf32>
    %c0_7 = arith.constant 0 : index
    %c0_8 = arith.constant 0 : index
    %22 = vector.load %arg3[%c0_7, %c0_8] : memref<1x32xf32, #tpu.memory_space<vmem>>, vector<1x32xf32>
    %23 = vector.broadcast %22 : vector<1x32xf32> to vector<16x32xf32>
    %24 = arith.addf %21, %23 : vector<16x32xf32>
    %25 = arith.truncf %24 : vector<16x32xf32> to vector<16x32xbf16>
    %c0_9 = arith.constant 0 : index
    %c0_10 = arith.constant 0 : index
    %26 = vector.load %arg4[%c0_9, %c0_10] : memref<16x32xbf16, #tpu.memory_space<vmem>>, vector<16x32xbf16>
    tpu.vector_store %arg4[%c0_9, %c0_10], %25 {strides = array<i32>} : memref<16x32xbf16, #tpu.memory_space<vmem>>, vector<16x32xbf16>,
    return
  }
  func.func @transform_0(%arg0: i32) -> (i32, i32) {
    %c0_i32 = arith.constant 0 : i32
    %c0_i32_0 = arith.constant 0 : i32
    return %arg0, %c0_i32 : i32, i32
  }
  func.func @transform_1(%arg0: i32) -> (i32, i32) {
    %c0_i32 = arith.constant 0 : i32
    %c0_i32_0 = arith.constant 0 : i32
    %c0_i32_1 = arith.constant 0 : i32
    return %c0_i32, %c0_i32_0 : i32, i32
  }
  func.func @transform_2(%arg0: i32) -> (i32, i32) {
    %c0_i32 = arith.constant 0 : i32
    %c0_i32_0 = arith.constant 0 : i32
    %c0_i32_1 = arith.constant 0 : i32
    return %c0_i32, %c0_i32_0 : i32, i32
  }
  func.func @transform_3(%arg0: i32) -> (i32, i32) {
    %c0_i32 = arith.constant 0 : i32
    %c0_i32_0 = arith.constant 0 : i32
    return %arg0, %c0_i32 : i32, i32
  }
}

module attributes {stable_mosaic.version = 11 : i64} {
  func.func @_ffn_block_kernel(%arg0: i32, %arg1: memref<16x32xbf16, #tpu.memory_space<vmem>>, %arg2: memref<32x64xbf16, #tpu.memory_space<vmem>>, %arg3: memref<1x64xf32, #tpu.memory_space<vmem>>, %arg4: memref<64x32xbf16, #tpu.memory_space<vmem>>, %arg5: memref<1x32xf32, #tpu.memory_space<vmem>>, %arg6: memref<1x32xf32, #tpu.memory_space<vmem>>, %arg7: memref<1x32xf32, #tpu.memory_space<vmem>>, %arg8: memref<16x32xbf16, #tpu.memory_space<vmem>>) attributes {dimension_semantics = [#tpu.dimension_semantics<parallel>], iteration_bounds = array<i64: 1>, scalar_prefetch = 0 : i64, scratch_operands = 0 : i64, tpu.core_type = #tpu.core_type<tc>, window_params = [{transform_indices = @transform_0, window_bounds = array<i64: 16, 32>}, {pipeline_mode = #tpu.pipeline_mode<synchronous>, transform_indices = @transform_1, window_bounds = array<i64: 32, 64>}, {pipeline_mode = #tpu.pipeline_mode<synchronous>, transform_indices = @transform_2, window_bounds = array<i64: 1, 64>}, {pipeline_mode = #tpu.pipeline_mode<synchronous>, transform_indices = @transform_3, window_bounds = array<i64: 64, 32>}, {pipeline_mode = #tpu.pipeline_mode<synchronous>, transform_indices = @transform_4, window_bounds = array<i64: 1, 32>}, {pipeline_mode = #tpu.pipeline_mode<synchronous>, transform_indices = @transform_5, window_bounds = array<i64: 1, 32>}, {pipeline_mode = #tpu.pipeline_mode<synchronous>, transform_indices = @transform_6, window_bounds = array<i64: 1, 32>}, {transform_indices = @transform_7, window_bounds = array<i64: 16, 32>}]} {
    %c0 = arith.constant 0 : index
    %c0_0 = arith.constant 0 : index
    %0 = vector.load %arg1[%c0, %c0_0] : memref<16x32xbf16, #tpu.memory_space<vmem>>, vector<16x32xbf16>
    %c0_1 = arith.constant 0 : index
    %c0_2 = arith.constant 0 : index
    %1 = vector.load %arg2[%c0_1, %c0_2] : memref<32x64xbf16, #tpu.memory_space<vmem>>, vector<32x64xbf16>
    %cst = arith.constant dense<0.000000e+00> : vector<16x64xf32>
    %2 = tpu.matmul %0, %1, %cst {dimension_numbers = #tpu.dot_dimension_numbers<[1], [0], [0], [1], [0, 0, 1, 1], [], []>} : vector<16x32xbf16>, vector<32x64xbf16>, vector<16x64xf32> -> vector<16x64xf32>
    %c0_3 = arith.constant 0 : index
    %c0_4 = arith.constant 0 : index
    %3 = vector.load %arg3[%c0_3, %c0_4] : memref<1x64xf32, #tpu.memory_space<vmem>>, vector<1x64xf32>
    %4 = vector.broadcast %3 : vector<1x64xf32> to vector<16x64xf32>
    %5 = arith.addf %2, %4 : vector<16x64xf32>
    %6 = arith.mulf %5, %5 : vector<16x64xf32>
    %7 = arith.mulf %5, %6 : vector<16x64xf32>
    %cst_5 = arith.constant 4.471500e-02 : f32
    %8 = vector.broadcast %cst_5 : f32 to vector<16x64xf32>
    %9 = arith.mulf %8, %7 : vector<16x64xf32>
    %10 = arith.addf %5, %9 : vector<16x64xf32>
    %cst_6 = arith.constant 0.797884583 : f32
    %11 = vector.broadcast %cst_6 : f32 to vector<16x64xf32>
    %12 = arith.mulf %11, %10 : vector<16x64xf32>
    %13 = math.tanh %12 : vector<16x64xf32>
    %cst_7 = arith.constant 1.000000e+00 : f32
    %14 = vector.broadcast %cst_7 : f32 to vector<16x64xf32>
    %15 = arith.addf %14, %13 : vector<16x64xf32>
    %cst_8 = arith.constant 5.000000e-01 : f32
    %16 = vector.broadcast %cst_8 : f32 to vector<16x64xf32>
    %17 = arith.mulf %16, %15 : vector<16x64xf32>
    %18 = arith.mulf %5, %17 : vector<16x64xf32>
    %19 = arith.truncf %18 : vector<16x64xf32> to vector<16x64xbf16>
    %c0_9 = arith.constant 0 : index
    %c0_10 = arith.constant 0 : index
    %20 = vector.load %arg4[%c0_9, %c0_10] : memref<64x32xbf16, #tpu.memory_space<vmem>>, vector<64x32xbf16>
    %cst_11 = arith.constant dense<0.000000e+00> : vector<16x32xf32>
    %21 = tpu.matmul %19, %20, %cst_11 {dimension_numbers = #tpu.dot_dimension_numbers<[1], [0], [0], [1], [0, 0, 1, 1], [], []>} : vector<16x64xbf16>, vector<64x32xbf16>, vector<16x32xf32> -> vector<16x32xf32>
    %c0_12 = arith.constant 0 : index
    %c0_13 = arith.constant 0 : index
    %22 = vector.load %arg5[%c0_12, %c0_13] : memref<1x32xf32, #tpu.memory_space<vmem>>, vector<1x32xf32>
    %23 = vector.broadcast %22 : vector<1x32xf32> to vector<16x32xf32>
    %24 = arith.addf %21, %23 : vector<16x32xf32>
    %25 = arith.extf %0 : vector<16x32xbf16> to vector<16x32xf32>
    %26 = arith.addf %24, %25 : vector<16x32xf32>
    %cst_14 = arith.constant dense<0.000000e+00> : vector<16xf32>
    %27 = vector.multi_reduction <add>, %26, %cst_14 [1] : vector<16x32xf32> to vector<16xf32>
    %28 = vector.shape_cast %27 : vector<16xf32> to vector<16x1xf32>
    %cst_15 = arith.constant 3.200000e+01 : f32
    %29 = vector.broadcast %cst_15 : f32 to vector<16x1xf32>
    %30 = arith.divf %28, %29 : vector<16x1xf32>
    %31 = vector.broadcast %30 : vector<16x1xf32> to vector<16x32xf32>
    %32 = arith.subf %26, %31 : vector<16x32xf32>
    %33 = arith.mulf %32, %32 : vector<16x32xf32>
    %cst_16 = arith.constant dense<0.000000e+00> : vector<16xf32>
    %34 = vector.multi_reduction <add>, %33, %cst_16 [1] : vector<16x32xf32> to vector<16xf32>
    %35 = vector.shape_cast %34 : vector<16xf32> to vector<16x1xf32>
    %cst_17 = arith.constant 3.200000e+01 : f32
    %36 = vector.broadcast %cst_17 : f32 to vector<16x1xf32>
    %37 = arith.divf %35, %36 : vector<16x1xf32>
    %38 = vector.broadcast %30 : vector<16x1xf32> to vector<16x32xf32>
    %39 = arith.subf %26, %38 : vector<16x32xf32>
    %cst_18 = arith.constant 9.99999996E-13 : f32
    %40 = vector.broadcast %cst_18 : f32 to vector<16x1xf32>
    %41 = arith.addf %37, %40 : vector<16x1xf32>
    %42 = math.rsqrt %41 : vector<16x1xf32>
    %43 = vector.broadcast %42 : vector<16x1xf32> to vector<16x32xf32>
    %44 = arith.mulf %39, %43 : vector<16x32xf32>
    %c0_19 = arith.constant 0 : index
    %c0_20 = arith.constant 0 : index
    %45 = vector.load %arg6[%c0_19, %c0_20] : memref<1x32xf32, #tpu.memory_space<vmem>>, vector<1x32xf32>
    %46 = vector.broadcast %45 : vector<1x32xf32> to vector<16x32xf32>
    %47 = arith.mulf %44, %46 : vector<16x32xf32>
    %c0_21 = arith.constant 0 : index
    %c0_22 = arith.constant 0 : index
    %48 = vector.load %arg7[%c0_21, %c0_22] : memref<1x32xf32, #tpu.memory_space<vmem>>, vector<1x32xf32>
    %49 = vector.broadcast %48 : vector<1x32xf32> to vector<16x32xf32>
    %50 = arith.addf %47, %49 : vector<16x32xf32>
    %51 = arith.truncf %50 : vector<16x32xf32> to vector<16x32xbf16>
    %c0_23 = arith.constant 0 : index
    %c0_24 = arith.constant 0 : index
    %52 = vector.load %arg8[%c0_23, %c0_24] : memref<16x32xbf16, #tpu.memory_space<vmem>>, vector<16x32xbf16>
    tpu.vector_store %arg8[%c0_23, %c0_24], %51 {strides = array<i32>} : memref<16x32xbf16, #tpu.memory_space<vmem>>, vector<16x32xbf16>,
    return
  }
  func.func @transform_0(%arg0: i32) -> (i32, i32) {
    %c0_i32 = arith.constant 0 : i32
    %c0_i32_0 = arith.constant 0 : i32
    return %arg0, %c0_i32 : i32, i32
  }
  func.func @transform_1(%arg0: i32) -> (i32, i32) {
    %c0_i32 = arith.constant 0 : i32
    %c0_i32_0 = arith.constant 0 : i32
    %c0_i32_1 = arith.constant 0 : i32
    return %c0_i32, %c0_i32_0 : i32, i32
  }
  func.func @transform_2(%arg0: i32) -> (i32, i32) {
    %c0_i32 = arith.constant 0 : i32
    %c0_i32_0 = arith.constant 0 : i32
    %c0_i32_1 = arith.constant 0 : i32
    return %c0_i32, %c0_i32_0 : i32, i32
  }
  func.func @transform_3(%arg0: i32) -> (i32, i32) {
    %c0_i32 = arith.constant 0 : i32
    %c0_i32_0 = arith.constant 0 : i32
    %c0_i32_1 = arith.constant 0 : i32
    return %c0_i32, %c0_i32_0 : i32, i32
  }
  func.func @transform_4(%arg0: i32) -> (i32, i32) {
    %c0_i32 = arith.constant 0 : i32
    %c0_i32_0 = arith.constant 0 : i32
    %c0_i32_1 = arith.constant 0 : i32
    return %c0_i32, %c0_i32_0 : i32, i32
  }
  func.func @transform_5(%arg0: i32) -> (i32, i32) {
    %c0_i32 = arith.constant 0 : i32
    %c0_i32_0 = arith.constant 0 : i32
    %c0_i32_1 = arith.constant 0 : i32
    return %c0_i32, %c0_i32_0 : i32, i32
  }
  func.func @transform_6(%arg0: i32) -> (i32, i32) {
    %c0_i32 = arith.constant 0 : i32
    %c0_i32_0 = arith.constant 0 : i32
    %c0_i32_1 = arith.constant 0 : i32
    return %c0_i32, %c0_i32_0 : i32, i32
  }
  func.func @transform_7(%arg0: i32) -> (i32, i32) {
    %c0_i32 = arith.constant 0 : i32
    %c0_i32_0 = arith.constant 0 : i32
    return %arg0, %c0_i32 : i32, i32
  }
}

module attributes {stable_mosaic.version = 11 : i64} {
  func.func @_attn_block_kernel(%arg0: i32, %arg1: memref<1x8x32xbf16, #tpu.memory_space<vmem>>, %arg2: memref<1x1x8xf32, #tpu.memory_space<vmem>>, %arg3: memref<32x96xbf16, #tpu.memory_space<vmem>>, %arg4: memref<1x96xf32, #tpu.memory_space<vmem>>, %arg5: memref<32x32xbf16, #tpu.memory_space<vmem>>, %arg6: memref<1x32xf32, #tpu.memory_space<vmem>>, %arg7: memref<1x32xf32, #tpu.memory_space<vmem>>, %arg8: memref<1x32xf32, #tpu.memory_space<vmem>>, %arg9: memref<1x8x32xbf16, #tpu.memory_space<vmem>>) attributes {dimension_semantics = [#tpu.dimension_semantics<parallel>], iteration_bounds = array<i64: 2>, scalar_prefetch = 0 : i64, scratch_operands = 0 : i64, tpu.core_type = #tpu.core_type<tc>, window_params = [{transform_indices = @transform_0, window_bounds = array<i64: 1, 8, 32>}, {transform_indices = @transform_1, window_bounds = array<i64: 1, 1, 8>}, {pipeline_mode = #tpu.pipeline_mode<synchronous>, transform_indices = @transform_2, window_bounds = array<i64: 32, 96>}, {pipeline_mode = #tpu.pipeline_mode<synchronous>, transform_indices = @transform_3, window_bounds = array<i64: 1, 96>}, {pipeline_mode = #tpu.pipeline_mode<synchronous>, transform_indices = @transform_4, window_bounds = array<i64: 32, 32>}, {pipeline_mode = #tpu.pipeline_mode<synchronous>, transform_indices = @transform_5, window_bounds = array<i64: 1, 32>}, {pipeline_mode = #tpu.pipeline_mode<synchronous>, transform_indices = @transform_6, window_bounds = array<i64: 1, 32>}, {pipeline_mode = #tpu.pipeline_mode<synchronous>, transform_indices = @transform_7, window_bounds = array<i64: 1, 32>}, {transform_indices = @transform_8, window_bounds = array<i64: 1, 8, 32>}]} {
    %c0 = arith.constant 0 : index
    %c0_0 = arith.constant 0 : index
    %c0_1 = arith.constant 0 : index
    %0 = vector.load %arg1[%c0, %c0_0, %c0_1] : memref<1x8x32xbf16, #tpu.memory_space<vmem>>, vector<1x8x32xbf16>
    %1 = vector.shape_cast %0 : vector<1x8x32xbf16> to vector<8x32xbf16>
    %c0_2 = arith.constant 0 : index
    %c0_3 = arith.constant 0 : index
    %2 = vector.load %arg3[%c0_2, %c0_3] : memref<32x96xbf16, #tpu.memory_space<vmem>>, vector<32x96xbf16>
    %cst = arith.constant dense<0.000000e+00> : vector<8x96xf32>
    %3 = tpu.matmul %1, %2, %cst {dimension_numbers = #tpu.dot_dimension_numbers<[1], [0], [0], [1], [0, 0, 1, 1], [], []>} : vector<8x32xbf16>, vector<32x96xbf16>, vector<8x96xf32> -> vector<8x96xf32>
    %c0_4 = arith.constant 0 : index
    %c0_5 = arith.constant 0 : index
    %4 = vector.load %arg4[%c0_4, %c0_5] : memref<1x96xf32, #tpu.memory_space<vmem>>, vector<1x96xf32>
    %5 = vector.broadcast %4 : vector<1x96xf32> to vector<8x96xf32>
    %6 = arith.addf %3, %5 : vector<8x96xf32>
    %7 = arith.truncf %6 : vector<8x96xf32> to vector<8x96xbf16>
    %8 = vector.extract_strided_slice %7 {offsets = [0, 0], sizes = [8, 32], strides = [1, 1]} : vector<8x96xbf16> to vector<8x32xbf16>
    %9 = vector.shape_cast %8 : vector<8x32xbf16> to vector<8x4x8xbf16>
    %10 = tpu.transpose %9, [1, 0, 2] : vector<8x4x8xbf16> -> vector<4x8x8xbf16>
    %11 = vector.extract_strided_slice %7 {offsets = [0, 32], sizes = [8, 32], strides = [1, 1]} : vector<8x96xbf16> to vector<8x32xbf16>
    %12 = vector.shape_cast %11 : vector<8x32xbf16> to vector<8x4x8xbf16>
    %13 = tpu.transpose %12, [1, 0, 2] : vector<8x4x8xbf16> -> vector<4x8x8xbf16>
    %14 = vector.extract_strided_slice %7 {offsets = [0, 64], sizes = [8, 32], strides = [1, 1]} : vector<8x96xbf16> to vector<8x32xbf16>
    %15 = vector.shape_cast %14 : vector<8x32xbf16> to vector<8x4x8xbf16>
    %16 = tpu.transpose %15, [1, 0, 2] : vector<8x4x8xbf16> -> vector<4x8x8xbf16>
    %c0_6 = arith.constant 0 : index
    %c0_7 = arith.constant 0 : index
    %c0_8 = arith.constant 0 : index
    %17 = vector.load %arg2[%c0_6, %c0_7, %c0_8] : memref<1x1x8xf32, #tpu.memory_space<vmem>>, vector<1x1x8xf32>
    %18 = vector.shape_cast %17 : vector<1x1x8xf32> to vector<1x8xf32>
    %c0_9 = arith.constant 0 : index
    %c0_10 = arith.constant 0 : index
    %19 = vector.load %arg5[%c0_9, %c0_10] : memref<32x32xbf16, #tpu.memory_space<vmem>>, vector<32x32xbf16>
    %c0_11 = arith.constant 0 : index
    %c0_12 = arith.constant 0 : index
    %20 = vector.load %arg6[%c0_11, %c0_12] : memref<1x32xf32, #tpu.memory_space<vmem>>, vector<1x32xf32>
    %c0_13 = arith.constant 0 : index
    %c0_14 = arith.constant 0 : index
    %21 = vector.load %arg7[%c0_13, %c0_14] : memref<1x32xf32, #tpu.memory_space<vmem>>, vector<1x32xf32>
    %c0_15 = arith.constant 0 : index
    %c0_16 = arith.constant 0 : index
    %22 = vector.load %arg8[%c0_15, %c0_16] : memref<1x32xf32, #tpu.memory_space<vmem>>, vector<1x32xf32>
    %cst_17 = arith.constant dense<0.000000e+00> : vector<4x8x8xf32>
    %23 = tpu.matmul %10, %13, %cst_17 {dimension_numbers = #tpu.dot_dimension_numbers<[2], [2], [1], [1], [0, 0, 0, 1, 1, 1], [0], [0]>} : vector<4x8x8xbf16>, vector<4x8x8xbf16>, vector<4x8x8xf32> -> vector<4x8x8xf32>
    %cst_18 = arith.constant 0.353553385 : f32
    %24 = vector.broadcast %cst_18 : f32 to vector<4x8x8xf32>
    %25 = arith.mulf %23, %24 : vector<4x8x8xf32>
    %26 = vector.shape_cast %18 : vector<1x8xf32> to vector<1x1x8xf32>
    %27 = vector.broadcast %26 : vector<1x1x8xf32> to vector<4x8x8xf32>
    %28 = arith.addf %25, %27 : vector<4x8x8xf32>
    %cst_19 = arith.constant dense<0xFF800000> : vector<4x8xf32>
    %29 = vector.multi_reduction <maximumf>, %28, %cst_19 [2] : vector<4x8x8xf32> to vector<4x8xf32>
    %30 = vector.shape_cast %29 : vector<4x8xf32> to vector<4x8x1xf32>
    %31 = vector.broadcast %30 : vector<4x8x1xf32> to vector<4x8x8xf32>
    %32 = arith.subf %28, %31 : vector<4x8x8xf32>
    %33 = math.exp %32 : vector<4x8x8xf32>
    %cst_20 = arith.constant dense<0.000000e+00> : vector<4x8xf32>
    %34 = vector.multi_reduction <add>, %33, %cst_20 [2] : vector<4x8x8xf32> to vector<4x8xf32>
    %35 = vector.shape_cast %34 : vector<4x8xf32> to vector<4x8x1xf32>
    %36 = tpu.reciprocal %35 : vector<4x8x1xf32> -> vector<4x8x1xf32>
    %37 = vector.broadcast %36 : vector<4x8x1xf32> to vector<4x8x8xf32>
    %38 = arith.mulf %33, %37 : vector<4x8x8xf32>
    %39 = arith.truncf %38 : vector<4x8x8xf32> to vector<4x8x8xbf16>
    %cst_21 = arith.constant dense<0.000000e+00> : vector<4x8x8xf32>
    %40 = tpu.matmul %39, %16, %cst_21 {dimension_numbers = #tpu.dot_dimension_numbers<[2], [1], [1], [2], [0, 0, 0, 1, 1, 2], [0], [0]>} : vector<4x8x8xbf16>, vector<4x8x8xbf16>, vector<4x8x8xf32> -> vector<4x8x8xf32>
    %41 = tpu.transpose %40, [1, 0, 2] : vector<4x8x8xf32> -> vector<8x4x8xf32>
    %42 = vector.shape_cast %41 : vector<8x4x8xf32> to vector<8x32xf32>
    %43 = arith.truncf %42 : vector<8x32xf32> to vector<8x32xbf16>
    %cst_22 = arith.constant dense<0.000000e+00> : vector<8x32xf32>
    %44 = tpu.matmul %43, %19, %cst_22 {dimension_numbers = #tpu.dot_dimension_numbers<[1], [0], [0], [1], [0, 0, 1, 1], [], []>} : vector<8x32xbf16>, vector<32x32xbf16>, vector<8x32xf32> -> vector<8x32xf32>
    %45 = vector.broadcast %20 : vector<1x32xf32> to vector<8x32xf32>
    %46 = arith.addf %44, %45 : vector<8x32xf32>
    %47 = arith.extf %1 : vector<8x32xbf16> to vector<8x32xf32>
    %48 = arith.addf %46, %47 : vector<8x32xf32>
    %cst_23 = arith.constant dense<0.000000e+00> : vector<8xf32>
    %49 = vector.multi_reduction <add>, %48, %cst_23 [1] : vector<8x32xf32> to vector<8xf32>
    %50 = vector.shape_cast %49 : vector<8xf32> to vector<8x1xf32>
    %cst_24 = arith.constant 3.200000e+01 : f32
    %51 = vector.broadcast %cst_24 : f32 to vector<8x1xf32>
    %52 = arith.divf %50, %51 : vector<8x1xf32>
    %53 = vector.broadcast %52 : vector<8x1xf32> to vector<8x32xf32>
    %54 = arith.subf %48, %53 : vector<8x32xf32>
    %55 = arith.mulf %54, %54 : vector<8x32xf32>
    %cst_25 = arith.constant dense<0.000000e+00> : vector<8xf32>
    %56 = vector.multi_reduction <add>, %55, %cst_25 [1] : vector<8x32xf32> to vector<8xf32>
    %57 = vector.shape_cast %56 : vector<8xf32> to vector<8x1xf32>
    %cst_26 = arith.constant 3.200000e+01 : f32
    %58 = vector.broadcast %cst_26 : f32 to vector<8x1xf32>
    %59 = arith.divf %57, %58 : vector<8x1xf32>
    %60 = vector.broadcast %52 : vector<8x1xf32> to vector<8x32xf32>
    %61 = arith.subf %48, %60 : vector<8x32xf32>
    %cst_27 = arith.constant 9.99999996E-13 : f32
    %62 = vector.broadcast %cst_27 : f32 to vector<8x1xf32>
    %63 = arith.addf %59, %62 : vector<8x1xf32>
    %64 = math.rsqrt %63 : vector<8x1xf32>
    %65 = vector.broadcast %64 : vector<8x1xf32> to vector<8x32xf32>
    %66 = arith.mulf %61, %65 : vector<8x32xf32>
    %67 = vector.broadcast %21 : vector<1x32xf32> to vector<8x32xf32>
    %68 = arith.mulf %66, %67 : vector<8x32xf32>
    %69 = vector.broadcast %22 : vector<1x32xf32> to vector<8x32xf32>
    %70 = arith.addf %68, %69 : vector<8x32xf32>
    %71 = arith.truncf %70 : vector<8x32xf32> to vector<8x32xbf16>
    %c0_28 = arith.constant 0 : index
    %c0_29 = arith.constant 0 : index
    %c0_30 = arith.constant 0 : index
    %72 = vector.load %arg9[%c0_28, %c0_29, %c0_30] : memref<1x8x32xbf16, #tpu.memory_space<vmem>>, vector<1x8x32xbf16>
    %73 = vector.shape_cast %72 : vector<1x8x32xbf16> to vector<8x32xbf16>
    %74 = vector.shape_cast %71 : vector<8x32xbf16> to vector<1x8x32xbf16>
    tpu.vector_store %arg9[%c0_28, %c0_29, %c0_30], %74 {strides = array<i32>} : memref<1x8x32xbf16, #tpu.memory_space<vmem>>, vector<1x8x32xbf16>,
    return
  }
  func.func @transform_0(%arg0: i32) -> (i32, i32, i32) {
    %c0_i32 = arith.constant 0 : i32
    %c0_i32_0 = arith.constant 0 : i32
    %c0_i32_1 = arith.constant 0 : i32
    return %arg0, %c0_i32, %c0_i32_0 : i32, i32, i32
  }
  func.func @transform_1(%arg0: i32) -> (i32, i32, i32) {
    %c0_i32 = arith.constant 0 : i32
    %c0_i32_0 = arith.constant 0 : i32
    %c0_i32_1 = arith.constant 0 : i32
    return %arg0, %c0_i32, %c0_i32_0 : i32, i32, i32
  }
  func.func @transform_2(%arg0: i32) -> (i32, i32) {
    %c0_i32 = arith.constant 0 : i32
    %c0_i32_0 = arith.constant 0 : i32
    %c0_i32_1 = arith.constant 0 : i32
    return %c0_i32, %c0_i32_0 : i32, i32
  }
  func.func @transform_3(%arg0: i32) -> (i32, i32) {
    %c0_i32 = arith.constant 0 : i32
    %c0_i32_0 = arith.constant 0 : i32
    %c0_i32_1 = arith.constant 0 : i32
    return %c0_i32, %c0_i32_0 : i32, i32
  }
  func.func @transform_4(%arg0: i32) -> (i32, i32) {
    %c0_i32 = arith.constant 0 : i32
    %c0_i32_0 = arith.constant 0 : i32
    %c0_i32_1 = arith.constant 0 : i32
    return %c0_i32, %c0_i32_0 : i32, i32
  }
  func.func @transform_5(%arg0: i32) -> (i32, i32) {
    %c0_i32 = arith.constant 0 : i32
    %c0_i32_0 = arith.constant 0 : i32
    %c0_i32_1 = arith.constant 0 : i32
    return %c0_i32, %c0_i32_0 : i32, i32
  }
  func.func @transform_6(%arg0: i32) -> (i32, i32) {
    %c0_i32 = arith.constant 0 : i32
    %c0_i32_0 = arith.constant 0 : i32
    %c0_i32_1 = arith.constant 0 : i32
    return %c0_i32, %c0_i32_0 : i32, i32
  }
  func.func @transform_7(%arg0: i32) -> (i32, i32) {
    %c0_i32 = arith.constant 0 : i32
    %c0_i32_0 = arith.constant 0 : i32
    %c0_i32_1 = arith.constant 0 : i32
    return %c0_i32, %c0_i32_0 : i32, i32
  }
  func.func @transform_8(%arg0: i32) -> (i32, i32, i32) {
    %c0_i32 = arith.constant 0 : i32
    %c0_i32_0 = arith.constant 0 : i32
    %c0_i32_1 = arith.constant 0 : i32
    return %arg0, %c0_i32, %c0_i32_0 : i32, i32, i32
  }
}

module attributes {stable_mosaic.version = 11 : i64} {
  func.func @_head_kernel(%arg0: memref<2x32xbf16, #tpu.memory_space<vmem>>, %arg1: memref<32x32xbf16, #tpu.memory_space<vmem>>, %arg2: memref<1x32xf32, #tpu.memory_space<vmem>>, %arg3: memref<32x128xbf16, #tpu.memory_space<vmem>>, %arg4: memref<1x128xf32, #tpu.memory_space<vmem>>, %arg5: memref<2x128xf32, #tpu.memory_space<vmem>>) attributes {dimension_semantics = [], scalar_prefetch = 0 : i64, scratch_operands = 0 : i64, tpu.core_type = #tpu.core_type<tc>} {
    %c0 = arith.constant 0 : index
    %c0_0 = arith.constant 0 : index
    %0 = vector.load %arg0[%c0, %c0_0] : memref<2x32xbf16, #tpu.memory_space<vmem>>, vector<2x32xbf16>
    %c0_1 = arith.constant 0 : index
    %c0_2 = arith.constant 0 : index
    %1 = vector.load %arg1[%c0_1, %c0_2] : memref<32x32xbf16, #tpu.memory_space<vmem>>, vector<32x32xbf16>
    %cst = arith.constant dense<0.000000e+00> : vector<2x32xf32>
    %2 = tpu.matmul %0, %1, %cst {dimension_numbers = #tpu.dot_dimension_numbers<[1], [0], [0], [1], [0, 0, 1, 1], [], []>} : vector<2x32xbf16>, vector<32x32xbf16>, vector<2x32xf32> -> vector<2x32xf32>
    %c0_3 = arith.constant 0 : index
    %c0_4 = arith.constant 0 : index
    %3 = vector.load %arg2[%c0_3, %c0_4] : memref<1x32xf32, #tpu.memory_space<vmem>>, vector<1x32xf32>
    %4 = vector.broadcast %3 : vector<1x32xf32> to vector<2x32xf32>
    %5 = arith.addf %2, %4 : vector<2x32xf32>
    %6 = math.tanh %5 : vector<2x32xf32>
    %7 = arith.truncf %6 : vector<2x32xf32> to vector<2x32xbf16>
    %c0_5 = arith.constant 0 : index
    %c0_6 = arith.constant 0 : index
    %8 = vector.load %arg3[%c0_5, %c0_6] : memref<32x128xbf16, #tpu.memory_space<vmem>>, vector<32x128xbf16>
    %cst_7 = arith.constant dense<0.000000e+00> : vector<2x128xf32>
    %9 = tpu.matmul %7, %8, %cst_7 {dimension_numbers = #tpu.dot_dimension_numbers<[1], [0], [0], [1], [0, 0, 1, 1], [], []>} : vector<2x32xbf16>, vector<32x128xbf16>, vector<2x128xf32> -> vector<2x128xf32>
    %c0_8 = arith.constant 0 : index
    %c0_9 = arith.constant 0 : index
    %10 = vector.load %arg4[%c0_8, %c0_9] : memref<1x128xf32, #tpu.memory_space<vmem>>, vector<1x128xf32>
    %11 = vector.broadcast %10 : vector<1x128xf32> to vector<2x128xf32>
    %12 = arith.addf %9, %11 : vector<2x128xf32>
    %cst_10 = arith.constant 0.000000e+00 : f32
    %13 = vector.broadcast %cst_10 : f32 to vector<2x128xf32>
    %14 = arith.maximumf %12, %13 : vector<2x128xf32>
    %c0_11 = arith.constant 0 : index
    %c0_12 = arith.constant 0 : index
    %15 = vector.load %arg5[%c0_11, %c0_12] : memref<2x128xf32, #tpu.memory_space<vmem>>, vector<2x128xf32>
    tpu.vector_store %arg5[%c0_11, %c0_12], %14 {strides = array<i32>} : memref<2x128xf32, #tpu.memory_space<vmem>>, vector<2x128xf32>,
    return
  }
}

</mosaic_0001>

<llo_original>
// kernel: sensitive_classifier_forward.6
$region0: #{sensitive_classifier_forward.6}
  #allocation0 [shape = 'u32[]', space=smem, size = 0x4, offset = 0x4, fixed_abs, tag = 'smem constant byte address 0x4 - core index']
  #allocation1 [shape = 'u32[144,128]{1,0:T(1,128)}', space=vmem, size = 0x12000, scoped, tag = 'internal scratch']
  %s0 = inlined_call_operand.vmem [shape: f32[16,32], index: 0, kind: input, shape index: {}]
  %s1 = inlined_call_operand.vmem [shape: f32[1,32], index: 1, kind: input, shape index: {}]
  %s2 = inlined_call_operand.vmem [shape: f32[1,32], index: 2, kind: input, shape index: {}]
  %s3 = inlined_call_operand.vmem [shape: bf16[16,32], index: 3, kind: output, shape index: {}]
  %s4 = sld [smem:[#allocation0]]
  $region22: #{sensitive_classifier_forward.6} parent=0
    _
  %s6 = ssub.s32 1, %s4
  %s7 = scalar_select 0, %s6, %s4
  // Predicated region
  $region2: #{sensitive_classifier_forward.6} parent=0 // pred_check
    _
  $region3: #{sensitive_classifier_forward.6} parent=0 // pred_check_branch
    %9 = sbr.rel (0) target = $region5
  $region4: #{sensitive_classifier_forward.6} parent=0 // pred_region
    _
  $region5: #{sensitive_classifier_forward.6} parent=0 // pred_fallthru
    _
  // Predicated region
  $region6: #{sensitive_classifier_forward.6} parent=0 // pred_check
    _
  $region7: #{sensitive_classifier_forward.6} parent=0 // pred_check_branch
    %11 = sbr.rel (0) target = $region9
  $region8: #{sensitive_classifier_forward.6} parent=0 // pred_region
    _
  $region9: #{sensitive_classifier_forward.6} parent=0 // pred_fallthru
    _
  // Predicated region
  $region10: #{sensitive_classifier_forward.6} parent=0 // pred_check
    _
  $region11: #{sensitive_classifier_forward.6} parent=0 // pred_check_branch
    %13 = sbr.rel (0) target = $region13
  $region12: #{sensitive_classifier_forward.6} parent=0 // pred_region
    _
  $region13: #{sensitive_classifier_forward.6} parent=0 // pred_fallthru
    _
  %v14 = vld [vmem:[%s0] sm:$0xff]
  %v15 = vld [vmem:[%s0 + $0x8] sm:$0xff]
  %vm16 = vcmask 261120
  %v17 = vsel %vm16, %v14, 0.0
  %18 = vadd.xlane.f32.xlu0 %v17
  %v19 = vpop.xlane.xlu0 %18
  %v20 = vsel %vm16, %v15, 0.0
  %21 = vadd.xlane.f32.xlu0 %v20
  %v22 = vpop.xlane.xlu0 %21
  %v23 = vrcp.pop 32.0
  %v24 = vmul.f32 %v19, %v23
  %v25 = vmul.f32 %v22, %v23
  %v26 = vsub.f32 %v14, %v24
  %v27 = vsub.f32 %v15, %v25
  %v28 = vmul.f32 %v26, %v26
  %v29 = vmul.f32 %v27, %v27
  %v30 = vsel %vm16, %v28, 0.0
  %31 = vadd.xlane.f32.xlu0 %v30
  %v32 = vpop.xlane.xlu0 %31
  %v33 = vsel %vm16, %v29, 0.0
  %34 = vadd.xlane.f32.xlu0 %v33
  %v35 = vpop.xlane.xlu0 %34
  %v36 = vmul.f32 %v32, %v23
  %v37 = vmul.f32 %v35, %v23
  %v38 = vadd.f32 %v36, 1e-12
  %v39 = vadd.f32 %v37, 1e-12
  %v40 = vrsqrt.pop %v38
  %v41 = vrsqrt.pop %v39
  %v42 = vmul.f32 %v26, %v40
  %v43 = vmul.f32 %v27, %v41
  %v44 = vld [vmem:[%s1] sm:$0x1]
  %v46 = vlaneseq
  %v47 = vshrl.u32 %v46, 7
  %v48 = vsub.s32 0, %v47
  %v49 = vrot.slane %v44, %v48
  %v51 = vmul.f32 %v42, %v49
  %v52 = vmul.f32 %v43, %v49
  %v53 = vld [vmem:[%s2] sm:$0x1]
  %v55 = vlaneseq
  %v56 = vshrl.u32 %v55, 7
  %v57 = vsub.s32 0, %v56
  %v58 = vrot.slane %v53, %v57
  %v60 = vadd.f32 %v51, %v58
  %v61 = vadd.f32 %v52, %v58
  %v62 = vpack.c.bf16 %v61, %v60
  %v64 = vunpack.c.l.b16 %v62
  %v65 = vunpack.c.h.b16 %v62
  %v66 = vpack.c.b16 %v64, %v64
  %v67 = vpack.c.b16 %v65, %v65
  %vm70 = vcmask 257024
  %71 = vst.msk [vmem:[%s3] sm:$0xf] %vm70, %v66
  %72 = vst.msk [vmem:[%s3 + $0x4] sm:$0xf] %vm70, %v67
  // Predicated region
  $region14: #{sensitive_classifier_forward.6} parent=0 // pred_check
    _
  $region15: #{sensitive_classifier_forward.6} parent=0 // pred_check_branch
    %74 = sbr.rel (0) target = $region17
  $region16: #{sensitive_classifier_forward.6} parent=0 // pred_region
    _
  $region17: #{sensitive_classifier_forward.6} parent=0 // pred_fallthru
    _
  // Predicated region
  $region18: #{sensitive_classifier_forward.6} parent=0 // pred_check
    _
  $region19: #{sensitive_classifier_forward.6} parent=0 // pred_check_branch
    %76 = sbr.rel (0) target = $region21
  $region20: #{sensitive_classifier_forward.6} parent=0 // pred_region
    _
  $region21: #{sensitive_classifier_forward.6} parent=0 // pred_fallthru
    _

// kernel: sensitive_classifier_forward.8
$region0: #{sensitive_classifier_forward.8}
  #allocation0 [shape = 'u32[]', space=smem, size = 0x4, offset = 0x4, fixed_abs, tag = 'smem constant byte address 0x4 - core index']
  #allocation1 [shape = 'u32[144,128]{1,0:T(1,128)}', space=vmem, size = 0x12000, scoped, tag = 'internal scratch']
  %s0 = inlined_call_operand.vmem [shape: bf16[16,32], index: 0, kind: input, shape index: {}]
  %s1 = inlined_call_operand.vmem [shape: bf16[32,64], index: 1, kind: input, shape index: {}]
  %s2 = inlined_call_operand.vmem [shape: f32[1,64], index: 2, kind: input, shape index: {}]
  %s3 = inlined_call_operand.vmem [shape: bf16[64,32], index: 3, kind: input, shape index: {}]
  %s4 = inlined_call_operand.vmem [shape: f32[1,32], index: 4, kind: input, shape index: {}]
  %s5 = inlined_call_operand.vmem [shape: f32[1,32], index: 5, kind: input, shape index: {}]
  %s6 = inlined_call_operand.vmem [shape: f32[1,32], index: 6, kind: input, shape index: {}]
  %s7 = inlined_call_operand.vmem [shape: bf16[16,32], index: 7, kind: output, shape index: {}]
  %s8 = sld [smem:[#allocation0]]
  $region38: #{sensitive_classifier_forward.8} parent=0
    _
  %s10 = ssub.s32 1, %s8
  %s11 = scalar_select 0, %s10, %s8
  // Predicated region
  $region2: #{sensitive_classifier_forward.8} parent=0 // pred_check
    _
  $region3: #{sensitive_classifier_forward.8} parent=0 // pred_check_branch
    %13 = sbr.rel (0) target = $region5
  $region4: #{sensitive_classifier_forward.8} parent=0 // pred_region
    _
  $region5: #{sensitive_classifier_forward.8} parent=0 // pred_fallthru
    _
  // Predicated region
  $region6: #{sensitive_classifier_forward.8} parent=0 // pred_check
    _
  $region7: #{sensitive_classifier_forward.8} parent=0 // pred_check_branch
    %15 = sbr.rel (0) target = $region9
  $region8: #{sensitive_classifier_forward.8} parent=0 // pred_region
    _
  $region9: #{sensitive_classifier_forward.8} parent=0 // pred_fallthru
    _
  // Predicated region
  $region10: #{sensitive_classifier_forward.8} parent=0 // pred_check
    _
  $region11: #{sensitive_classifier_forward.8} parent=0 // pred_check_branch
    %17 = sbr.rel (0) target = $region13
  $region12: #{sensitive_classifier_forward.8} parent=0 // pred_region
    _
  $region13: #{sensitive_classifier_forward.8} parent=0 // pred_fallthru
    _
  // Predicated region
  $region14: #{sensitive_classifier_forward.8} parent=0 // pred_check
    _
  $region15: #{sensitive_classifier_forward.8} parent=0 // pred_check_branch
    %19 = sbr.rel (0) target = $region17
  $region16: #{sensitive_classifier_forward.8} parent=0 // pred_region
    _
  $region17: #{sensitive_classifier_forward.8} parent=0 // pred_fallthru
    _
  // Predicated region
  $region18: #{sensitive_classifier_forward.8} parent=0 // pred_check
    _
  $region19: #{sensitive_classifier_forward.8} parent=0 // pred_check_branch
    %21 = sbr.rel (0) target = $region21
  $region20: #{sensitive_classifier_forward.8} parent=0 // pred_region
    _
  $region21: #{sensitive_classifier_forward.8} parent=0 // pred_fallthru
    _
  // Predicated region
  $region22: #{sensitive_classifier_forward.8} parent=0 // pred_check
    _
  $region23: #{sensitive_classifier_forward.8} parent=0 // pred_check_branch
    %23 = sbr.rel (0) target = $region25
  $region24: #{sensitive_classifier_forward.8} parent=0 // pred_region
    _
  $region25: #{sensitive_classifier_forward.8} parent=0 // pred_fallthru
    _
  // Predicated region
  $region26: #{sensitive_classifier_forward.8} parent=0 // pred_check
    _
  $region27: #{sensitive_classifier_forward.8} parent=0 // pred_check_branch
    %25 = sbr.rel (0) target = $region29
  $region28: #{sensitive_classifier_forward.8} parent=0 // pred_region
    _
  $region29: #{sensitive_classifier_forward.8} parent=0 // pred_fallthru
    _
  %v27 = vld [vmem:[%s0] sm:$0xf]
  %v28 = vld [vmem:[%s0 + $0x4] sm:$0xf]
  %v29 = vld [vmem:[%s1] sm:$0xf]
  %v30 = vld [vmem:[%s1 + $0x4] sm:$0xf]
  %v31 = vld [vmem:[%s1 + $0x8] sm:$0xf]
  %v32 = vld [vmem:[%s1 + $0xc] sm:$0xf]
  %v33 = vld [vmem:[%s2] sm:$0x1]
  %v35 = vlaneseq
  %v36 = vshrl.u32 %v35, 7
  %v37 = vsub.s32 0, %v36
  %v38 = vrot.slane %v33, %v37
  %v42 = vunpack.c.l.b16 %v27
  %v43 = vunpack.c.l.b16 %v28
  %v44 = vpack.c.b16 %v43, %v42
  %v49 = vunpack.c.l.b16 %v29
  %v50 = vunpack.c.l.b16 %v30
  %v51 = vunpack.c.l.b16 %v31
  %v52 = vunpack.c.l.b16 %v32
  %v53 = vpack.c.b16 %v50, %v49
  %v54 = vpack.c.b16 %v52, %v51
  %vm57 = vcmask 261120
  %v59 = vsel %vm57, %v44, 0
  %61 = vmatprep.subr.bf16.mxu0 0
  %62 = vmatpush1.bf16.msra.mxu0 0
  %63 = vmatprep.subr.bf16.mxu0 0
  %64 = vmatpush1.bf16.msra.mxu0 0
  %65 = vmatprep.subr.bf16.mxu0 0
  %66 = vmatpush1.bf16.msra.mxu0 0
  %67 = vmatprep.subr.bf16.mxu0 0
  %68 = vmatpush1.bf16.msra.mxu0 0
  %69 = vmatprep.subr.bf16.mxu0 0
  %70 = vmatpush1.bf16.msra.mxu0 0
  %71 = vmatprep.subr.bf16.mxu0 0
  %72 = vmatpush1.bf16.msra.mxu0 0
  %73 = vmatprep.subr.bf16.mxu0 0
  %74 = vmatpush1.bf16.msra.mxu0 %v54
  %75 = vmatprep.subr.bf16.mxu0 0
  %76 = vmatpush1.bf16.msra.mxu0 %v53
  %77 = vmatprep.subr.bf16.mxu0 0
  %78 = vmatpush2.bf16.msra.mxu0 0
  %79 = vmatprep.subr.bf16.mxu0 0
  %80 = vmatpush2.bf16.msra.mxu0 0
  %81 = vmatprep.subr.bf16.mxu0 0
  %82 = vmatpush2.bf16.msra.mxu0 0
  %83 = vmatprep.subr.bf16.mxu0 0
  %84 = vmatpush2.bf16.msra.mxu0 0
  %85 = vmatprep.subr.bf16.mxu0 0
  %86 = vmatpush2.bf16.msra.mxu0 0
  %87 = vmatprep.subr.bf16.mxu0 0
  %88 = vmatpush2.bf16.msra.mxu0 0
  %89 = vmatprep.subr.bf16.mxu0 0
  %90 = vmatpush2.bf16.msra.mxu0 0
  %91 = vmatprep.subr.bf16.mxu0 0
  %92 = vmatpush2.bf16.msra.mxu0 0
  %93 = vmatprep.mubr.bf16.mxu0 0
  %94 = vmatmul.mubr.bf16.gmra.mxu0 %v59
  %v95 = vpop.f32.mrf.mxu0
  %v96 = vadd.f32 %v38, %v95
  %v97 = vpop.f32.mrf.mxu0
  %v98 = vpop.f32.mrf.mxu0
  %v99 = vadd.f32 %v38, %v98
  %v100 = vpop.f32.mrf.mxu0
  %101 = vdwg.mxu0
  %v102 = vmul.f32 %v96, %v96
  %v103 = vmul.f32 %v99, %v99
  %v104 = vmul.f32 %v96, %v102
  %v105 = vmul.f32 %v99, %v103
  %v106 = vmul.f32 %v104, 0.044715
  %v107 = vmul.f32 %v105, 0.044715
  %v108 = vadd.f32 %v96, %v106
  %v109 = vadd.f32 %v99, %v107
  %v110 = vmul.f32 %v108, 0.7978846
  %v111 = vmul.f32 %v109, 0.7978846
  %v112 = vtanh.pop %v110
  %v113 = vtanh.pop %v111
  %v114 = vadd.f32 %v112, 1.0
  %v115 = vadd.f32 %v113, 1.0
  %v116 = vmul.f32 %v114, 0.5
  %v117 = vmul.f32 %v115, 0.5
  %v118 = vmul.f32 %v96, %v116
  %v119 = vmul.f32 %v99, %v117
  %v120 = vpack.c.bf16 %v119, %v118
  %v121 = vld [vmem:[%s3] sm:$0xf]
  %v122 = vld [vmem:[%s3 + $0x4] sm:$0xf]
  %v123 = vld [vmem:[%s3 + $0x8] sm:$0xf]
  %v124 = vld [vmem:[%s3 + $0xc] sm:$0xf]
  %v125 = vld [vmem:[%s3 + $0x10] sm:$0xf]
  %v126 = vld [vmem:[%s3 + $0x14] sm:$0xf]
  %v127 = vld [vmem:[%s3 + $0x18] sm:$0xf]
  %v128 = vld [vmem:[%s3 + $0x1c] sm:$0xf]
  %v129 = vld [vmem:[%s4] sm:$0x1]
  %v131 = vlaneseq
  %v132 = vshrl.u32 %v131, 7
  %v133 = vsub.s32 0, %v132
  %v134 = vrot.slane %v129, %v133
  %v144 = vunpack.c.l.b16 %v121
  %v145 = vunpack.c.l.b16 %v122
  %v146 = vunpack.c.l.b16 %v123
  %v147 = vunpack.c.l.b16 %v124
  %v148 = vunpack.c.l.b16 %v125
  %v149 = vunpack.c.l.b16 %v126
  %v150 = vunpack.c.l.b16 %v127
  %v151 = vunpack.c.l.b16 %v128
  %v152 = vpack.c.b16 %v145, %v144
  %v153 = vpack.c.b16 %v147, %v146
  %v154 = vpack.c.b16 %v149, %v148
  %v155 = vpack.c.b16 %v151, %v150
  %vm160 = vcmask 523264
  %v162 = vsel %vm160, %v120, 0
  %164 = vmatprep.subr.bf16.mxu0 0
  %165 = vmatpush1.bf16.msra.mxu0 0
  %166 = vmatprep.subr.bf16.mxu0 0
  %167 = vmatpush1.bf16.msra.mxu0 0
  %168 = vmatprep.subr.bf16.mxu0 0
  %169 = vmatpush1.bf16.msra.mxu0 0
  %170 = vmatprep.subr.bf16.mxu0 0
  %171 = vmatpush1.bf16.msra.mxu0 0
  %172 = vmatprep.subr.bf16.mxu0 0
  %173 = vmatpush1.bf16.msra.mxu0 %v155
  %174 = vmatprep.subr.bf16.mxu0 0
  %175 = vmatpush1.bf16.msra.mxu0 %v154
  %176 = vmatprep.subr.bf16.mxu0 0
  %177 = vmatpush1.bf16.msra.mxu0 %v153
  %178 = vmatprep.subr.bf16.mxu0 0
  %179 = vmatpush1.bf16.msra.mxu0 %v152
  %180 = vmatprep.subr.bf16.mxu0 0
  %181 = vmatpush2.bf16.msra.mxu0 0
  %182 = vmatprep.subr.bf16.mxu0 0
  %183 = vmatpush2.bf16.msra.mxu0 0
  %184 = vmatprep.subr.bf16.mxu0 0
  %185 = vmatpush2.bf16.msra.mxu0 0
  %186 = vmatprep.subr.bf16.mxu0 0
  %187 = vmatpush2.bf16.msra.mxu0 0
  %188 = vmatprep.subr.bf16.mxu0 0
  %189 = vmatpush2.bf16.msra.mxu0 0
  %190 = vmatprep.subr.bf16.mxu0 0
  %191 = vmatpush2.bf16.msra.mxu0 0
  %192 = vmatprep.subr.bf16.mxu0 0
  %193 = vmatpush2.bf16.msra.mxu0 0
  %194 = vmatprep.subr.bf16.mxu0 0
  %195 = vmatpush2.bf16.msra.mxu0 0
  %196 = vmatprep.mubr.bf16.mxu0 0
  %197 = vmatmul.mubr.bf16.gmra.mxu0 %v162
  %v198 = vpop.f32.mrf.mxu0
  %v199 = vadd.f32 %v134, %v198
  %v200 = vpop.f32.mrf.mxu0
  %v201 = vpop.f32.mrf.mxu0
  %v202 = vadd.f32 %v134, %v201
  %v203 = vpop.f32.mrf.mxu0
  %204 = vdwg.mxu0
  %v205 = vunpack.c.l.bf16 %v27
  %v206 = vunpack.c.l.bf16 %v28
  %v207 = vadd.f32 %v199, %v205
  %v208 = vadd.f32 %v202, %v206
  %v209 = vsel %vm57, %v207, 0.0
  %210 = vadd.xlane.f32.xlu0 %v209
  %v211 = vpop.xlane.xlu0 %210
  %v212 = vsel %vm57, %v208, 0.0
  %213 = vadd.xlane.f32.xlu0 %v212
  %v214 = vpop.xlane.xlu0 %213
  %v215 = vrcp.pop 32.0
  %v216 = vmul.f32 %v211, %v215
  %v217 = vmul.f32 %v214, %v215
  %v218 = vsub.f32 %v207, %v216
  %v219 = vsub.f32 %v208, %v217
  %v220 = vmul.f32 %v218, %v218
  %v221 = vmul.f32 %v219, %v219
  %v222 = vsel %vm57, %v220, 0.0
  %223 = vadd.xlane.f32.xlu0 %v222
  %v224 = vpop.xlane.xlu0 %223
  %v225 = vsel %vm57, %v221, 0.0
  %226 = vadd.xlane.f32.xlu0 %v225
  %v227 = vpop.xlane.xlu0 %226
  %v228 = vmul.f32 %v224, %v215
  %v229 = vmul.f32 %v227, %v215
  %v230 = vadd.f32 %v228, 1e-12
  %v231 = vadd.f32 %v229, 1e-12
  %v232 = vrsqrt.pop %v230
  %v233 = vrsqrt.pop %v231
  %v234 = vmul.f32 %v218, %v232
  %v235 = vmul.f32 %v219, %v233
  %v236 = vld [vmem:[%s5] sm:$0x1]
  %v238 = vlaneseq
  %v239 = vshrl.u32 %v238, 7
  %v240 = vsub.s32 0, %v239
  %v241 = vrot.slane %v236, %v240
  %v243 = vmul.f32 %v234, %v241
  %v244 = vmul.f32 %v235, %v241
  %v245 = vld [vmem:[%s6] sm:$0x1]
  %v247 = vlaneseq
  %v248 = vshrl.u32 %v247, 7
  %v249 = vsub.s32 0, %v248
  %v250 = vrot.slane %v245, %v249
  %v252 = vadd.f32 %v243, %v250
  %v253 = vadd.f32 %v244, %v250
  %v254 = vpack.c.bf16 %v253, %v252
  %v256 = vunpack.c.l.b16 %v254
  %v257 = vunpack.c.h.b16 %v254
  %v258 = vpack.c.b16 %v256, %v256
  %v259 = vpack.c.b16 %v257, %v257
  %vm262 = vcmask 257024
  %263 = vst.msk [vmem:[%s7] sm:$0xf] %vm262, %v258
  %264 = vst.msk [vmem:[%s7 + $0x4] sm:$0xf] %vm262, %v259
  // Predicated region
  $region30: #{sensitive_classifier_forward.8} parent=0 // pred_check
    _
  $region31: #{sensitive_classifier_forward.8} parent=0 // pred_check_branch
    %266 = sbr.rel (0) target = $region33
  $region32: #{sensitive_classifier_forward.8} parent=0 // pred_region
    _
  $region33: #{sensitive_classifier_forward.8} parent=0 // pred_fallthru
    _
  // Predicated region
  $region34: #{sensitive_classifier_forward.8} parent=0 // pred_check
    _
  $region35: #{sensitive_classifier_forward.8} parent=0 // pred_check_branch
    %268 = sbr.rel (0) target = $region37
  $region36: #{sensitive_classifier_forward.8} parent=0 // pred_region
    _
  $region37: #{sensitive_classifier_forward.8} parent=0 // pred_fallthru
    _

// kernel: sensitive_classifier_forward.11
$region0: #{sensitive_classifier_forward.11}
  #allocation0 [shape = 'u32[]', space=smem, size = 0x4, offset = 0x4, fixed_abs, tag = 'smem constant byte address 0x4 - core index']
  #allocation1 [shape = 'u32[144,128]{1,0:T(1,128)}', space=vmem, size = 0x12000, scoped, tag = 'internal scratch']
  %s0 = inlined_call_operand.vmem [shape: bf16[2,32], index: 0, kind: input, shape index: {}]
  %s1 = inlined_call_operand.vmem [shape: bf16[32,32], index: 1, kind: input, shape index: {}]
  %s2 = inlined_call_operand.vmem [shape: f32[1,32], index: 2, kind: input, shape index: {}]
  %s3 = inlined_call_operand.vmem [shape: bf16[32,128], index: 3, kind: input, shape index: {}]
  %s4 = inlined_call_operand.vmem [shape: f32[1,128], index: 4, kind: input, shape index: {}]
  %s5 = inlined_call_operand.hbm [shape: f32[2,128], index: 5, kind: output, shape index: {}]
  %s6 = sld [smem:[#allocation0]]
  $region30: #{sensitive_classifier_forward.11} parent=0
    _
  %s8 = ssub.s32 1, %s6
  %s9 = scalar_select 0, %s8, %s6
  $region1: #{sensitive_classifier_forward.11} parent=0
    #allocation2 [shape = 'u8[1024]{0}', space=vmem, size = 0x400, scoped, tag = 'output window, operand 0, single buffered']
    #allocation3 [shape = 's32[1]{0}', space=sflag, size = 0x4, scoped, tag = 'scoped memory for sensitive_classifier_forward.11']
    %10 = vsyncpa [#allocation3], 0
    // Predicated region
    $region2: #{sensitive_classifier_forward.11} parent=1 // pred_check
      _
    $region3: #{sensitive_classifier_forward.11} parent=1 // pred_check_branch
      %12 = sbr.rel (0) target = $region5
    $region4: #{sensitive_classifier_forward.11} parent=1 // pred_region
      _
    $region5: #{sensitive_classifier_forward.11} parent=1 // pred_fallthru
      _
    // Predicated region
    $region6: #{sensitive_classifier_forward.11} parent=1 // pred_check
      _
    $region7: #{sensitive_classifier_forward.11} parent=1 // pred_check_branch
      %14 = sbr.rel (0) target = $region9
    $region8: #{sensitive_classifier_forward.11} parent=1 // pred_region
      _
    $region9: #{sensitive_classifier_forward.11} parent=1 // pred_fallthru
      _
    // Predicated region
    $region10: #{sensitive_classifier_forward.11} parent=1 // pred_check
      _
    $region11: #{sensitive_classifier_forward.11} parent=1 // pred_check_branch
      %16 = sbr.rel (0) target = $region13
    $region12: #{sensitive_classifier_forward.11} parent=1 // pred_region
      _
    $region13: #{sensitive_classifier_forward.11} parent=1 // pred_fallthru
      _
    // Predicated region
    $region14: #{sensitive_classifier_forward.11} parent=1 // pred_check
      _
    $region15: #{sensitive_classifier_forward.11} parent=1 // pred_check_branch
      %18 = sbr.rel (0) target = $region17
    $region16: #{sensitive_classifier_forward.11} parent=1 // pred_region
      _
    $region17: #{sensitive_classifier_forward.11} parent=1 // pred_fallthru
      _
    // Predicated region
    $region18: #{sensitive_classifier_forward.11} parent=1 // pred_check
      _
    $region19: #{sensitive_classifier_forward.11} parent=1 // pred_check_branch
      %20 = sbr.rel (0) target = $region21
    $region20: #{sensitive_classifier_forward.11} parent=1 // pred_region
      _
    $region21: #{sensitive_classifier_forward.11} parent=1 // pred_fallthru
      _
    %v22 = vld [vmem:[%s0] sm:$0x1]
    %v23 = vld [vmem:[%s1] sm:$0xf]
    %v24 = vld [vmem:[%s1 + $0x4] sm:$0xf]
    %v25 = vld [vmem:[%s1 + $0x8] sm:$0xf]
    %v26 = vld [vmem:[%s1 + $0xc] sm:$0xf]
    %v27 = vld [vmem:[%s2] sm:$0x1]
    %v29 = vlaneseq
    %v30 = vshrl.u32 %v29, 7
    %v31 = vsub.s32 0, %v30
    %v32 = vrot.slane %v27, %v31
    %v38 = vunpack.c.l.b16 %v23
    %v39 = vunpack.c.l.b16 %v24
    %v40 = vunpack.c.l.b16 %v25
    %v41 = vunpack.c.l.b16 %v26
    %v42 = vpack.c.b16 %v39, %v38
    %v43 = vpack.c.b16 %v41, %v40
    %vm46 = vcmask 261120
    %v48 = vsel %vm46, %v22, 0
    %50 = vmatprep.subr.bf16.mxu0 0
    %51 = vmatpush1.bf16.msra.mxu0 0
    %52 = vmatprep.subr.bf16.mxu0 0
    %53 = vmatpush1.bf16.msra.mxu0 0
    %54 = vmatprep.subr.bf16.mxu0 0
    %55 = vmatpush1.bf16.msra.mxu0 0
    %56 = vmatprep.subr.bf16.mxu0 0
    %57 = vmatpush1.bf16.msra.mxu0 0
    %58 = vmatprep.subr.bf16.mxu0 0
    %59 = vmatpush1.bf16.msra.mxu0 0
    %60 = vmatprep.subr.bf16.mxu0 0
    %61 = vmatpush1.bf16.msra.mxu0 0
    %62 = vmatprep.subr.bf16.mxu0 0
    %63 = vmatpush1.bf16.msra.mxu0 %v43
    %64 = vmatprep.subr.bf16.mxu0 0
    %65 = vmatpush1.bf16.msra.mxu0 %v42
    %66 = vmatprep.subr.bf16.mxu0 0
    %67 = vmatpush2.bf16.msra.mxu0 0
    %68 = vmatprep.subr.bf16.mxu0 0
    %69 = vmatpush2.bf16.msra.mxu0 0
    %70 = vmatprep.subr.bf16.mxu0 0
    %71 = vmatpush2.bf16.msra.mxu0 0
    %72 = vmatprep.subr.bf16.mxu0 0
    %73 = vmatpush2.bf16.msra.mxu0 0
    %74 = vmatprep.subr.bf16.mxu0 0
    %75 = vmatpush2.bf16.msra.mxu0 0
    %76 = vmatprep.subr.bf16.mxu0 0
    %77 = vmatpush2.bf16.msra.mxu0 0
    %78 = vmatprep.subr.bf16.mxu0 0
    %79 = vmatpush2.bf16.msra.mxu0 0
    %80 = vmatprep.subr.bf16.mxu0 0
    %81 = vmatpush2.bf16.msra.mxu0 0
    %82 = vmatprep.mubr.bf16.mxu0 0
    %83 = vmatmul.mubr.bf16.gmra.mxu0 %v48
    %v84 = vpop.f32.mrf.mxu0
    %v85 = vadd.f32 %v32, %v84
    %v86 = vpop.f32.mrf.mxu0
    %v87 = vpop.f32.mrf.mxu0
    %v88 = vpop.f32.mrf.mxu0
    %89 = vdwg.mxu0
    %v90 = vtanh.pop %v85
    %v91 = vpack.c.bf16 %v90, %v90
    %v92 = vld [vmem:[%s3] sm:$0xf]
    %v93 = vld [vmem:[%s3 + $0x4] sm:$0xf]
    %v94 = vld [vmem:[%s3 + $0x8] sm:$0xf]
    %v95 = vld [vmem:[%s3 + $0xc] sm:$0xf]
    %v96 = vld [vmem:[%s4] sm:$0x1]
    %v98 = vlaneseq
    %v99 = vshrl.u32 %v98, 7
    %v100 = vsub.s32 0, %v99
    %v101 = vrot.slane %v96, %v100
    %v107 = vunpack.c.l.b16 %v92
    %v108 = vunpack.c.l.b16 %v93
    %v109 = vunpack.c.l.b16 %v94
    %v110 = vunpack.c.l.b16 %v95
    %v111 = vpack.c.b16 %v108, %v107
    %v112 = vpack.c.b16 %v110, %v109
    %v116 = vsel %vm46, %v91, 0
    %118 = vmatprep.subr.bf16.mxu0 0
    %119 = vmatpush1.bf16.msra.mxu0 0
    %120 = vmatprep.subr.bf16.mxu0 0
    %121 = vmatpush1.bf16.msra.mxu0 0
    %122 = vmatprep.subr.bf16.mxu0 0
    %123 = vmatpush1.bf16.msra.mxu0 0
    %124 = vmatprep.subr.bf16.mxu0 0
    %125 = vmatpush1.bf16.msra.mxu0 0
    %126 = vmatprep.subr.bf16.mxu0 0
    %127 = vmatpush1.bf16.msra.mxu0 0
    %128 = vmatprep.subr.bf16.mxu0 0
    %129 = vmatpush1.bf16.msra.mxu0 0
    %130 = vmatprep.subr.bf16.mxu0 0
    %131 = vmatpush1.bf16.msra.mxu0 %v112
    %132 = vmatprep.subr.bf16.mxu0 0
    %133 = vmatpush1.bf16.msra.mxu0 %v111
    %134 = vmatprep.subr.bf16.mxu0 0
    %135 = vmatpush2.bf16.msra.mxu0 0
    %136 = vmatprep.subr.bf16.mxu0 0
    %137 = vmatpush2.bf16.msra.mxu0 0
    %138 = vmatprep.subr.bf16.mxu0 0
    %139 = vmatpush2.bf16.msra.mxu0 0
    %140 = vmatprep.subr.bf16.mxu0 0
    %141 = vmatpush2.bf16.msra.mxu0 0
    %142 = vmatprep.subr.bf16.mxu0 0
    %143 = vmatpush2.bf16.msra.mxu0 0
    %144 = vmatprep.subr.bf16.mxu0 0
    %145 = vmatpush2.bf16.msra.mxu0 0
    %146 = vmatprep.subr.bf16.mxu0 0
    %147 = vmatpush2.bf16.msra.mxu0 0
    %148 = vmatprep.subr.bf16.mxu0 0
    %149 = vmatpush2.bf16.msra.mxu0 0
    %150 = vmatprep.mubr.bf16.mxu0 0
    %151 = vmatmul.mubr.bf16.gmra.mxu0 %v116
    %v152 = vpop.f32.mrf.mxu0
    %v153 = vadd.f32 %v101, %v152
    %v154 = vpop.f32.mrf.mxu0
    %v155 = vpop.f32.mrf.mxu0
    %v156 = vpop.f32.mrf.mxu0
    %157 = vdwg.mxu0
    %v158 = vmax.f32 %v153, 0.0
    %159 = vst [vmem:[#allocation2] sm:$0x3] %v158
    // Predicated region
    $region22: #{sensitive_classifier_forward.11} parent=1 // pred_check
      _
    $region23: #{sensitive_classifier_forward.11} parent=1 // pred_check_branch
      %161 = sbr.rel (0) target = $region25
    $region24: #{sensitive_classifier_forward.11} parent=1 // pred_region
      %s163 = ssub.s32 32, 32
      %164 = vsyncadd [#allocation3], %s163
      %s166 = sshll.u32 [#allocation2], 4
      %s167 = int_to_ptr.vmem [resolvable:$true] %s166
      %169 = dma.vmem_to_hbm [thread:$0]  %s167, 32, %s5, [#allocation3]
    $region25: #{sensitive_classifier_forward.11} parent=1 // pred_fallthru
      _
    // Predicated region
    $region26: #{sensitive_classifier_forward.11} parent=1 // pred_check
      _
    $region27: #{sensitive_classifier_forward.11} parent=1 // pred_check_branch
      %171 = sbr.rel (0) target = $region29
    $region28: #{sensitive_classifier_forward.11} parent=1 // pred_region
      %172 = dma.done [#allocation3], 32
    $region29: #{sensitive_classifier_forward.11} parent=1 // pred_fallthru
      _
    %173 = vsyncpa [#allocation3], 1

// kernel: sensitive_classifier_forward.7
$region0: #{sensitive_classifier_forward.7}
  #allocation0 [shape = 'u32[]', space=smem, size = 0x4, offset = 0x4, fixed_abs, tag = 'smem constant byte address 0x4 - core index']
  #allocation1 [shape = 'u32[144,128]{1,0:T(1,128)}', space=vmem, size = 0x12000, scoped, tag = 'internal scratch']
  %s0 = inlined_call_operand.vmem [shape: bf16[2,8,32], index: 0, kind: input, shape index: {}]
  %s1 = inlined_call_operand.vmem [shape: f32[2,1,8], index: 1, kind: input, shape index: {}]
  %s2 = inlined_call_operand.vmem [shape: bf16[32,96], index: 2, kind: input, shape index: {}]
  %s3 = inlined_call_operand.vmem [shape: f32[1,96], index: 3, kind: input, shape index: {}]
  %s4 = inlined_call_operand.vmem [shape: bf16[32,32], index: 4, kind: input, shape index: {}]
  %s5 = inlined_call_operand.vmem [shape: f32[1,32], index: 5, kind: input, shape index: {}]
  %s6 = inlined_call_operand.vmem [shape: f32[1,32], index: 6, kind: input, shape index: {}]
  %s7 = inlined_call_operand.vmem [shape: f32[1,32], index: 7, kind: input, shape index: {}]
  %s8 = inlined_call_operand.vmem [shape: bf16[2,8,32], index: 8, kind: output, shape index: {}]
  %s9 = sld [smem:[#allocation0]]
  $region65: #{sensitive_classifier_forward.7} parent=0
    _
  %s11 = ssub.s32 1, %s9
  %s12 = scalar_select 0, %s11, %s9
  loop: start=0, step=1, limit=4
  $region2: #{sensitive_classifier_forward.7} parent=0 // loop_pre_header
    _
  $region3: #{sensitive_classifier_forward.7} parent=0 // loop_header
    %s14 = sphi 0, %s18
    %p15 = scmp.ge.s32.totalorder %s14, 4
    %s24 = sphi 0, %s26
    %s27 = sphi 0, %s24
    %s28 = sphi 0, %s27
    %s44 = sphi 0, %s28
    %s50 = sphi 0, %s52
    %s53 = sphi 0, %s50
    %s54 = sphi 0, %s53
    %s70 = sphi 0, %s54
    %s74 = sphi 0, %s74
    %s76 = sphi 0, %s74
    %s77 = sphi 0, %s76
    %s91 = sphi 0, %s77
    %s95 = sphi 0, %s95
    %s97 = sphi 0, %s95
    %s98 = sphi 0, %s97
    %s112 = sphi 0, %s98
    %s116 = sphi 0, %s116
    %s118 = sphi 0, %s116
    %s119 = sphi 0, %s118
    %s133 = sphi 0, %s119
    %s137 = sphi 0, %s137
    %s139 = sphi 0, %s137
    %s140 = sphi 0, %s139
    %s154 = sphi 0, %s140
    %s158 = sphi 0, %s158
    %s160 = sphi 0, %s158
    %s161 = sphi 0, %s160
    %s175 = sphi 0, %s161
    %s179 = sphi 0, %s179
    %s181 = sphi 0, %s179
    %s182 = sphi 0, %s181
    %s196 = sphi 0, %s182
    %s202 = sphi 0, %s204
    %s205 = sphi 0, %s202
    %s206 = sphi 0, %s205
    %s222 = sphi 0, %s206
  $region4: #{sensitive_classifier_forward.7} parent=0 // loop_header_branch
    %17 = sbr.rel (%p15) target = $region8
  $region5: #{sensitive_classifier_forward.7} parent=0 // loop_body
    %s19 = ssub.s32 %s14, 1
    %s20 = ssub.s32 %s14, 2
    %s21 = sadd.s32 %s14, 1
    %s22 = ssub.s32 %s14, %s21
    %p23 = scmp.eq.s32.totalorder %s22, 0
    %s25 = sadd.s32 %s24, 1
    %s26 = scalar_select %p23, %s24, %s25
    %p29 = pneg %p23
    %p30 = scmp.eq.s32.totalorder %s14, 1
    %p31 = por %p29, %p30
    %p32 = scmp.ne.s32.totalorder %s24, %s27
    %p33 = scmp.eq.s32.totalorder %s14, 0
    %p34 = por %p32, %p33
    %p35 = scmp.ne.s32.totalorder %s24, %s27
    %p36 = scmp.eq.s32.totalorder %s19, 1
    %p37 = por %p35, %p36
    %p38 = scmp.ne.s32.totalorder %s27, %s28
    %p39 = scmp.eq.s32.totalorder %s19, 0
    %p40 = por %p38, %p39
    %p41 = scmp.ne.s32.totalorder %s27, %s28
    %p42 = scmp.eq.s32.totalorder %s20, 1
    %p43 = por %p41, %p42
    %p45 = scmp.ne.s32.totalorder %s28, %s44
    %p46 = scmp.eq.s32.totalorder %s20, 0
    %p47 = por %p45, %p46
    %s48 = ssub.s32 %s14, %s21
    %p49 = scmp.eq.s32.totalorder %s48, 0
    %s51 = sadd.s32 %s50, 1
    %s52 = scalar_select %p49, %s50, %s51
    %p55 = pneg %p49
    %p56 = scmp.eq.s32.totalorder %s14, 1
    %p57 = por %p55, %p56
    %p58 = scmp.ne.s32.totalorder %s50, %s53
    %p59 = scmp.eq.s32.totalorder %s14, 0
    %p60 = por %p58, %p59
    %p61 = scmp.ne.s32.totalorder %s50, %s53
    %p62 = scmp.eq.s32.totalorder %s19, 1
    %p63 = por %p61, %p62
    %p64 = scmp.ne.s32.totalorder %s53, %s54
    %p65 = scmp.eq.s32.totalorder %s19, 0
    %p66 = por %p64, %p65
    %p67 = scmp.ne.s32.totalorder %s53, %s54
    %p68 = scmp.eq.s32.totalorder %s20, 1
    %p69 = por %p67, %p68
    %p71 = scmp.ne.s32.totalorder %s54, %s70
    %p72 = scmp.eq.s32.totalorder %s20, 0
    %p73 = por %p71, %p72
    %s75 = sadd.s32 %s74, 1
    %p78 = scmp.eq.s32.totalorder %s14, 1
    %p79 = scmp.ne.s32.totalorder %s74, %s76
    %p80 = scmp.eq.s32.totalorder %s14, 0
    %p81 = por %p79, %p80
    %p82 = scmp.ne.s32.totalorder %s74, %s76
    %p83 = scmp.eq.s32.totalorder %s19, 1
    %p84 = por %p82, %p83
    %p85 = scmp.ne.s32.totalorder %s76, %s77
    %p86 = scmp.eq.s32.totalorder %s19, 0
    %p87 = por %p85, %p86
    %p88 = scmp.ne.s32.totalorder %s76, %s77
    %p89 = scmp.eq.s32.totalorder %s20, 1
    %p90 = por %p88, %p89
    %p92 = scmp.ne.s32.totalorder %s77, %s91
    %p93 = scmp.eq.s32.totalorder %s20, 0
    %p94 = por %p92, %p93
    %s96 = sadd.s32 %s95, 1
    %p99 = scmp.eq.s32.totalorder %s14, 1
    %p100 = scmp.ne.s32.totalorder %s95, %s97
    %p101 = scmp.eq.s32.totalorder %s14, 0
    %p102 = por %p100, %p101
    %p103 = scmp.ne.s32.totalorder %s95, %s97
    %p104 = scmp.eq.s32.totalorder %s19, 1
    %p105 = por %p103, %p104
    %p106 = scmp.ne.s32.totalorder %s97, %s98
    %p107 = scmp.eq.s32.totalorder %s19, 0
    %p108 = por %p106, %p107
    %p109 = scmp.ne.s32.totalorder %s97, %s98
    %p110 = scmp.eq.s32.totalorder %s20, 1
    %p111 = por %p109, %p110
    %p113 = scmp.ne.s32.totalorder %s98, %s112
    %p114 = scmp.eq.s32.totalorder %s20, 0
    %p115 = por %p113, %p114
    %s117 = sadd.s32 %s116, 1
    %p120 = scmp.eq.s32.totalorder %s14, 1
    %p121 = scmp.ne.s32.totalorder %s116, %s118
    %p122 = scmp.eq.s32.totalorder %s14, 0
    %p123 = por %p121, %p122
    %p124 = scmp.ne.s32.totalorder %s116, %s118
    %p125 = scmp.eq.s32.totalorder %s19, 1
    %p126 = por %p124, %p125
    %p127 = scmp.ne.s32.totalorder %s118, %s119
    %p128 = scmp.eq.s32.totalorder %s19, 0
    %p129 = por %p127, %p128
    %p130 = scmp.ne.s32.totalorder %s118, %s119
    %p131 = scmp.eq.s32.totalorder %s20, 1
    %p132 = por %p130, %p131
    %p134 = scmp.ne.s32.totalorder %s119, %s133
    %p135 = scmp.eq.s32.totalorder %s20, 0
    %p136 = por %p134, %p135
    %s138 = sadd.s32 %s137, 1
    %p141 = scmp.eq.s32.totalorder %s14, 1
    %p142 = scmp.ne.s32.totalorder %s137, %s139
    %p143 = scmp.eq.s32.totalorder %s14, 0
    %p144 = por %p142, %p143
    %p145 = scmp.ne.s32.totalorder %s137, %s139
    %p146 = scmp.eq.s32.totalorder %s19, 1
    %p147 = por %p145, %p146
    %p148 = scmp.ne.s32.totalorder %s139, %s140
    %p149 = scmp.eq.s32.totalorder %s19, 0
    %p150 = por %p148, %p149
    %p151 = scmp.ne.s32.totalorder %s139, %s140
    %p152 = scmp.eq.s32.totalorder %s20, 1
    %p153 = por %p151, %p152
    %p155 = scmp.ne.s32.totalorder %s140, %s154
    %p156 = scmp.eq.s32.totalorder %s20, 0
    %p157 = por %p155, %p156
    %s159 = sadd.s32 %s158, 1
    %p162 = scmp.eq.s32.totalorder %s14, 1
    %p163 = scmp.ne.s32.totalorder %s158, %s160
    %p164 = scmp.eq.s32.totalorder %s14, 0
    %p165 = por %p163, %p164
    %p166 = scmp.ne.s32.totalorder %s158, %s160
    %p167 = scmp.eq.s32.totalorder %s19, 1
    %p168 = por %p166, %p167
    %p169 = scmp.ne.s32.totalorder %s160, %s161
    %p170 = scmp.eq.s32.totalorder %s19, 0
    %p171 = por %p169, %p170
    %p172 = scmp.ne.s32.totalorder %s160, %s161
    %p173 = scmp.eq.s32.totalorder %s20, 1
    %p174 = por %p172, %p173
    %p176 = scmp.ne.s32.totalorder %s161, %s175
    %p177 = scmp.eq.s32.totalorder %s20, 0
    %p178 = por %p176, %p177
    %s180 = sadd.s32 %s179, 1
    %p183 = scmp.eq.s32.totalorder %s14, 1
    %p184 = scmp.ne.s32.totalorder %s179, %s181
    %p185 = scmp.eq.s32.totalorder %s14, 0
    %p186 = por %p184, %p185
    %p187 = scmp.ne.s32.totalorder %s179, %s181
    %p188 = scmp.eq.s32.totalorder %s19, 1
    %p189 = por %p187, %p188
    %p190 = scmp.ne.s32.totalorder %s181, %s182
    %p191 = scmp.eq.s32.totalorder %s19, 0
    %p192 = por %p190, %p191
    %p193 = scmp.ne.s32.totalorder %s181, %s182
    %p194 = scmp.eq.s32.totalorder %s20, 1
    %p195 = por %p193, %p194
    %p197 = scmp.ne.s32.totalorder %s182, %s196
    %p198 = scmp.eq.s32.totalorder %s20, 0
    %p199 = por %p197, %p198
    %s200 = ssub.s32 %s14, %s21
    %p201 = scmp.eq.s32.totalorder %s200, 0
    %s203 = sadd.s32 %s202, 1
    %s204 = scalar_select %p201, %s202, %s203
    %p207 = pneg %p201
    %p208 = scmp.eq.s32.totalorder %s14, 1
    %p209 = por %p207, %p208
    %p210 = scmp.ne.s32.totalorder %s202, %s205
    %p211 = scmp.eq.s32.totalorder %s14, 0
    %p212 = por %p210, %p211
    %p213 = scmp.ne.s32.totalorder %s202, %s205
    %p214 = scmp.eq.s32.totalorder %s19, 1
    %p215 = por %p213, %p214
    %p216 = scmp.ne.s32.totalorder %s205, %s206
    %p217 = scmp.eq.s32.totalorder %s19, 0
    %p218 = por %p216, %p217
    %p219 = scmp.ne.s32.totalorder %s205, %s206
    %p220 = scmp.eq.s32.totalorder %s20, 1
    %p221 = por %p219, %p220
    %p223 = scmp.ne.s32.totalorder %s206, %s222
    %p224 = scmp.eq.s32.totalorder %s20, 0
    %p225 = por %p223, %p224
    %p226 = scmp.le.s32.totalorder 1, %s14
    %p227 = scmp.lt.s32.totalorder %s14, 3
    %p228 = pnand %p226, %p227
    %p229 = pneg %p228
    // Predicated region
    $region9: #{sensitive_classifier_forward.7} parent=5 // pred_check
      _
    $region10: #{sensitive_classifier_forward.7} parent=5 // pred_check_branch
      %231 = sbr.rel (%p228) target = $region12
    $region11: #{sensitive_classifier_forward.7} parent=5 // pred_region
      %s232 = ssub.s32 %s14, 1
      // Predicated region
      $region13: #{sensitive_classifier_forward.7} parent=11 // pred_check
        %p233 = pneg %p87
      $region14: #{sensitive_classifier_forward.7} parent=11 // pred_check_branch
        %235 = sbr.rel (%p233) target = $region16
      $region15: #{sensitive_classifier_forward.7} parent=11 // pred_region
        _
      $region16: #{sensitive_classifier_forward.7} parent=11 // pred_fallthru
        _
      // Predicated region
      $region17: #{sensitive_classifier_forward.7} parent=11 // pred_check
        %p236 = pneg %p108
      $region18: #{sensitive_classifier_forward.7} parent=11 // pred_check_branch
        %238 = sbr.rel (%p236) target = $region20
      $region19: #{sensitive_classifier_forward.7} parent=11 // pred_region
        _
      $region20: #{sensitive_classifier_forward.7} parent=11 // pred_fallthru
        _
      // Predicated region
      $region21: #{sensitive_classifier_forward.7} parent=11 // pred_check
        %p239 = pneg %p129
      $region22: #{sensitive_classifier_forward.7} parent=11 // pred_check_branch
        %241 = sbr.rel (%p239) target = $region24
      $region23: #{sensitive_classifier_forward.7} parent=11 // pred_region
        _
      $region24: #{sensitive_classifier_forward.7} parent=11 // pred_fallthru
        _
      // Predicated region
      $region25: #{sensitive_classifier_forward.7} parent=11 // pred_check
        %p242 = pneg %p150
      $region26: #{sensitive_classifier_forward.7} parent=11 // pred_check_branch
        %244 = sbr.rel (%p242) target = $region28
      $region27: #{sensitive_classifier_forward.7} parent=11 // pred_region
        _
      $region28: #{sensitive_classifier_forward.7} parent=11 // pred_fallthru
        _
      // Predicated region
      $region29: #{sensitive_classifier_forward.7} parent=11 // pred_check
        %p245 = pneg %p171
      $region30: #{sensitive_classifier_forward.7} parent=11 // pred_check_branch
        %247 = sbr.rel (%p245) target = $region32
      $region31: #{sensitive_classifier_forward.7} parent=11 // pred_region
        _
      $region32: #{sensitive_classifier_forward.7} parent=11 // pred_fallthru
        _
      // Predicated region
      $region33: #{sensitive_classifier_forward.7} parent=11 // pred_check
        %p248 = pneg %p192
      $region34: #{sensitive_classifier_forward.7} parent=11 // pred_check_branch
        %250 = sbr.rel (%p248) target = $region36
      $region35: #{sensitive_classifier_forward.7} parent=11 // pred_region
        _
      $region36: #{sensitive_classifier_forward.7} parent=11 // pred_fallthru
        _
    $region12: #{sensitive_classifier_forward.7} parent=5 // pred_fallthru
      _
    %p251 = scmp.lt.s32.totalorder %s14, 2
    // Predicated region
    $region37: #{sensitive_classifier_forward.7} parent=5 // pred_check
      %p252 = pneg %p251
    $region38: #{sensitive_classifier_forward.7} parent=5 // pred_check_branch
      %254 = sbr.rel (%p252) target = $region40
    $region39: #{sensitive_classifier_forward.7} parent=5 // pred_region
      // Predicated region
      $region41: #{sensitive_classifier_forward.7} parent=39 // pred_check
        %p255 = pneg %p34
      $region42: #{sensitive_classifier_forward.7} parent=39 // pred_check_branch
        %257 = sbr.rel (%p255) target = $region44
      $region43: #{sensitive_classifier_forward.7} parent=39 // pred_region
        %p258 = scmp.lt.s32.totalorder %s14, 1
        %s259 = scalar_select %p258, %s14, 1
        %s260 = smul.addr %s259, 4
        %s261 = scalar_lea.vmem %s0, %s260
      $region44: #{sensitive_classifier_forward.7} parent=39 // pred_fallthru
        _
      // Predicated region
      $region45: #{sensitive_classifier_forward.7} parent=39 // pred_check
        %p262 = pneg %p60
      $region46: #{sensitive_classifier_forward.7} parent=39 // pred_check_branch
        %264 = sbr.rel (%p262) target = $region48
      $region47: #{sensitive_classifier_forward.7} parent=39 // pred_region
        %p265 = scmp.lt.s32.totalorder %s14, 1
        %s266 = scalar_select %p265, %s14, 1
        %s267 = scalar_lea.vmem %s1, %s266
      $region48: #{sensitive_classifier_forward.7} parent=39 // pred_fallthru
        _
    $region40: #{sensitive_classifier_forward.7} parent=5 // pred_fallthru
      _
    %p268 = scmp.le.s32.totalorder 1, %s14
    %p269 = scmp.lt.s32.totalorder %s14, 3
    %p270 = pnand %p268, %p269
    %p271 = pneg %p270
    // Predicated region
    $region49: #{sensitive_classifier_forward.7} parent=5 // pred_check
      _
    $region50: #{sensitive_classifier_forward.7} parent=5 // pred_check_branch
      %273 = sbr.rel (%p270) target = $region52
    $region51: #{sensitive_classifier_forward.7} parent=5 // pred_region
      %s274 = ssub.s32 %s14, 1
      %p275 = scmp.lt.s32.totalorder %s19, 1
      %s276 = scalar_select %p275, %s19, 1
      %s277 = smul.addr %s276, 4
      %s278 = scalar_lea.vmem %s0, %s277
      %p279 = pneg %p40
      %p280 = pneg %p37
      %p281 = scmp.lt.s32.totalorder %s19, 1
      %s282 = scalar_select %p281, %s19, 1
      %s283 = scalar_lea.vmem %s1, %s282
      %p284 = pneg %p66
      %p285 = pneg %p63
      %p286 = pneg %p87
      %p287 = pneg %p84
      %p288 = pneg %p108
      %p289 = pneg %p105
      %p290 = pneg %p129
      %p291 = pneg %p126
      %p292 = pneg %p150
      %p293 = pneg %p147
      %p294 = pneg %p171
      %p295 = pneg %p168
      %p296 = pneg %p192
      %p297 = pneg %p189
      %p298 = pneg %p218
      %p299 = pneg %p215
      %p300 = scmp.lt.s32.totalorder %s19, 1
      %s301 = scalar_select %p300, %s19, 1
      %s302 = smul.addr %s301, 4
      %s303 = scalar_lea.vmem %s8, %s302
      %p304 = scmp.lt.s32.totalorder %s19, 1
      %s305 = scalar_select %p304, %s19, 1
      %s306 = smul.addr %s305, 4
      %s307 = scalar_lea.vmem %s0, %s306
      %p308 = scmp.lt.s32.totalorder %s19, 1
      %s309 = scalar_select %p308, %s19, 1
      %s310 = scalar_lea.vmem %s1, %s309
      %p311 = scmp.lt.s32.totalorder %s19, 1
      %s312 = scalar_select %p311, %s19, 1
      %s313 = smul.addr %s312, 4
      %s314 = scalar_lea.vmem %s8, %s313
      %v316 = vld [vmem:[%s307] sm:$0xf]
      %v317 = vld [vmem:[%s2] sm:$0xf]
      %v318 = vld [vmem:[%s2 + $0x4] sm:$0xf]
      %v319 = vld [vmem:[%s2 + $0x8] sm:$0xf]
      %v320 = vld [vmem:[%s2 + $0xc] sm:$0xf]
      %v321 = vld [vmem:[%s3] sm:$0x1]
      %v323 = vlaneseq
      %v324 = vshrl.u32 %v323, 7
      %v325 = vsub.s32 0, %v324
      %v326 = vrot.slane %v321, %v325
      %v332 = vunpack.c.l.b16 %v317
      %v333 = vunpack.c.l.b16 %v318
      %v334 = vunpack.c.l.b16 %v319
      %v335 = vunpack.c.l.b16 %v320
      %v336 = vpack.c.b16 %v333, %v332
      %v337 = vpack.c.b16 %v335, %v334
      %vm340 = vcmask 261120
      %v342 = vsel %vm340, %v316, 0
      %344 = vmatprep.subr.bf16.mxu0 0
      %345 = vmatpush1.bf16.msra.mxu0 0
      %346 = vmatprep.subr.bf16.mxu0 0
      %347 = vmatpush1.bf16.msra.mxu0 0
      %348 = vmatprep.subr.bf16.mxu0 0
      %349 = vmatpush1.bf16.msra.mxu0 0
      %350 = vmatprep.subr.bf16.mxu0 0
      %351 = vmatpush1.bf16.msra.mxu0 0
      %352 = vmatprep.subr.bf16.mxu0 0
      %353 = vmatpush1.bf16.msra.mxu0 0
      %354 = vmatprep.subr.bf16.mxu0 0
      %355 = vmatpush1.bf16.msra.mxu0 0
      %356 = vmatprep.subr.bf16.mxu0 0
      %357 = vmatpush1.bf16.msra.mxu0 %v337
      %358 = vmatprep.subr.bf16.mxu0 0
      %359 = vmatpush1.bf16.msra.mxu0 %v336
      %360 = vmatprep.subr.bf16.mxu0 0
      %361 = vmatpush2.bf16.msra.mxu0 0
      %362 = vmatprep.subr.bf16.mxu0 0
      %363 = vmatpush2.bf16.msra.mxu0 0
      %364 = vmatprep.subr.bf16.mxu0 0
      %365 = vmatpush2.bf16.msra.mxu0 0
      %366 = vmatprep.subr.bf16.mxu0 0
      %367 = vmatpush2.bf16.msra.mxu0 0
      %368 = vmatprep.subr.bf16.mxu0 0
      %369 = vmatpush2.bf16.msra.mxu0 0
      %370 = vmatprep.subr.bf16.mxu0 0
      %371 = vmatpush2.bf16.msra.mxu0 0
      %372 = vmatprep.subr.bf16.mxu0 0
      %373 = vmatpush2.bf16.msra.mxu0 0
      %374 = vmatprep.subr.bf16.mxu0 0
      %375 = vmatpush2.bf16.msra.mxu0 0
      %376 = vmatprep.mubr.bf16.mxu0 0
      %377 = vmatmul.mubr.bf16.gmra.mxu0 %v342
      %v378 = vpop.f32.mrf.mxu0
      %v379 = vadd.f32 %v326, %v378
      %v380 = vpop.f32.mrf.mxu0
      %v381 = vpop.f32.mrf.mxu0
      %v382 = vpop.f32.mrf.mxu0
      %383 = vdwg.mxu0
      %v384 = vpack.c.bf16 %v379, %v379
      %386 = vrot.lane.b32.xlu0 %v384, 120
      %v387 = vpop.permute.xlu0 %386
      %388 = vrot.lane.b32.xlu0 %v384, 112
      %v389 = vpop.permute.xlu0 %388
      %390 = vrot.lane.b32.xlu0 %v384, 104
      %v391 = vpop.permute.xlu0 %390
      %v393 = vunpack.c.l.s4 1983009808
      %v394 = vunpack.c.0.s8 %v393
      %v395 = vlaneseq
      %v396 = vshrl.u32 %v395, 7
      %v397 = vsub.s32 %v394, %v396
      %v398 = vrot.slane %v384, %v397
      %v401 = vunpack.c.l.s4 1983009808
      %v402 = vunpack.c.0.s8 %v401
      %v403 = vlaneseq
      %v404 = vshrl.u32 %v403, 7
      %v405 = vsub.s32 %v402, %v404
      %v406 = vrot.slane %v389, %v405
      %v407 = vcombine.low %v398, %v406
      %v408 = vcombine.high %v398, %v406
      %v410 = vunpack.c.l.s4 1934713408
      %v411 = vunpack.c.0.s8 %v410
      %v412 = vlaneseq
      %v413 = vshrl.u32 %v412, 7
      %v414 = vsub.s32 %v411, %v413
      %v415 = vrot.slane %v407, %v414
      %v417 = vunpack.c.l.s4 1934713408
      %v418 = vunpack.c.0.s8 %v417
      %v419 = vlaneseq
      %v420 = vshrl.u32 %v419, 7
      %v421 = vsub.s32 %v418, %v420
      %v422 = vrot.slane %v408, %v421
      %v423 = vcombine.high %v415, 0
      %v424 = vcombine.high %v422, 0
      %v427 = vunpack.c.l.s4 1983009808
      %v428 = vunpack.c.0.s8 %v427
      %v429 = vlaneseq
      %v430 = vshrl.u32 %v429, 7
      %v431 = vsub.s32 %v428, %v430
      %v432 = vrot.slane %v387, %v431
      %v435 = vunpack.c.l.s4 1983009808
      %v436 = vunpack.c.0.s8 %v435
      %v437 = vlaneseq
      %v438 = vshrl.u32 %v437, 7
      %v439 = vsub.s32 %v436, %v438
      %v440 = vrot.slane %v391, %v439
      %v441 = vcombine.low %v432, %v440
      %v442 = vcombine.high %v432, %v440
      %v444 = vunpack.c.l.s4 1934713408
      %v445 = vunpack.c.0.s8 %v444
      %v446 = vlaneseq
      %v447 = vshrl.u32 %v446, 7
      %v448 = vsub.s32 %v445, %v447
      %v449 = vrot.slane %v441, %v448
      %v451 = vunpack.c.l.s4 1934713408
      %v452 = vunpack.c.0.s8 %v451
      %v453 = vlaneseq
      %v454 = vshrl.u32 %v453, 7
      %v455 = vsub.s32 %v452, %v454
      %v456 = vrot.slane %v442, %v455
      %v457 = vcombine.high %v449, 0
      %v458 = vcombine.high %v456, 0
      %v461 = vpack.i.b16 %v449, %v415
      %v463 = vshrl.u32 %v415, 16
      %v464 = vshrl.u32 %v449, 16
      %v465 = vpack.i.b16 %v464, %v463
      %v469 = vpack.i.b16 %v457, %v423
      %v471 = vshrl.u32 %v423, 16
      %v472 = vshrl.u32 %v457, 16
      %v473 = vpack.i.b16 %v472, %v471
      %v477 = vpack.i.b16 %v456, %v422
      %v479 = vshrl.u32 %v422, 16
      %v480 = vshrl.u32 %v456, 16
      %v481 = vpack.i.b16 %v480, %v479
      %v485 = vpack.i.b16 %v458, %v424
      %v487 = vshrl.u32 %v424, 16
      %v488 = vshrl.u32 %v458, 16
      %v489 = vpack.i.b16 %v488, %v487
      %v491 = vcombine.low %v461, %v477
      %v493 = vunpack.c.l.s4 1983009808
      %v494 = vunpack.c.0.s8 %v493
      %v495 = vlaneseq
      %v496 = vshrl.u32 %v495, 7
      %v497 = vsub.s32 %v494, %v496
      %v498 = vrot.slane %v491, %v497
      %v499 = vcombine.low %v469, %v485
      %v501 = vunpack.c.l.s4 1983009808
      %v502 = vunpack.c.0.s8 %v501
      %v503 = vlaneseq
      %v504 = vshrl.u32 %v503, 7
      %v505 = vsub.s32 %v502, %v504
      %v506 = vrot.slane %v499, %v505
      %v507 = vcombine.low %v498, %v506
      %v509 = vunpack.c.l.s4 1934713408
      %v510 = vunpack.c.0.s8 %v509
      %v511 = vlaneseq
      %v512 = vshrl.u32 %v511, 7
      %v513 = vsub.s32 %v510, %v512
      %v514 = vrot.slane %v507, %v513
      %v515 = vcombine.high %v514, 0
      %v516 = vcombine.low %v465, %v481
      %v518 = vunpack.c.l.s4 1983009808
      %v519 = vunpack.c.0.s8 %v518
      %v520 = vlaneseq
      %v521 = vshrl.u32 %v520, 7
      %v522 = vsub.s32 %v519, %v521
      %v523 = vrot.slane %v516, %v522
      %v524 = vcombine.low %v473, %v489
      %v526 = vunpack.c.l.s4 1983009808
      %v527 = vunpack.c.0.s8 %v526
      %v528 = vlaneseq
      %v529 = vshrl.u32 %v528, 7
      %v530 = vsub.s32 %v527, %v529
      %v531 = vrot.slane %v524, %v530
      %v532 = vcombine.low %v523, %v531
      %v534 = vunpack.c.l.s4 1934713408
      %v535 = vunpack.c.0.s8 %v534
      %v536 = vlaneseq
      %v537 = vshrl.u32 %v536, 7
      %v538 = vsub.s32 %v535, %v537
      %v539 = vrot.slane %v532, %v538
      %v540 = vcombine.high %v539, 0
      %v543 = vpack.i.b16 %v539, %v514
      %v544 = vshrl.u32 %v514, 16
      %v545 = vshrl.u32 %v539, 16
      %v546 = vpack.i.b16 %v545, %v544
      %v549 = vpack.i.b16 %v540, %v515
      %v550 = vshrl.u32 %v515, 16
      %v551 = vshrl.u32 %v540, 16
      %v552 = vpack.i.b16 %v551, %v550
      %553 = vrot.lane.b32.xlu0 %v384, 96
      %v554 = vpop.permute.xlu0 %553
      %555 = vrot.lane.b32.xlu0 %v387, 96
      %v556 = vpop.permute.xlu0 %555
      %557 = vrot.lane.b32.xlu0 %v389, 96
      %v558 = vpop.permute.xlu0 %557
      %559 = vrot.lane.b32.xlu0 %v391, 96
      %v560 = vpop.permute.xlu0 %559
      %v563 = vunpack.c.l.s4 1983009808
      %v564 = vunpack.c.0.s8 %v563
      %v565 = vlaneseq
      %v566 = vshrl.u32 %v565, 7
      %v567 = vsub.s32 %v564, %v566
      %v568 = vrot.slane %v554, %v567
      %v571 = vunpack.c.l.s4 1983009808
      %v572 = vunpack.c.0.s8 %v571
      %v573 = vlaneseq
      %v574 = vshrl.u32 %v573, 7
      %v575 = vsub.s32 %v572, %v574
      %v576 = vrot.slane %v558, %v575
      %v577 = vcombine.low %v568, %v576
      %v578 = vcombine.high %v568, %v576
      %v580 = vunpack.c.l.s4 1934713408
      %v581 = vunpack.c.0.s8 %v580
      %v582 = vlaneseq
      %v583 = vshrl.u32 %v582, 7
      %v584 = vsub.s32 %v581, %v583
      %v585 = vrot.slane %v577, %v584
      %v587 = vunpack.c.l.s4 1934713408
      %v588 = vunpack.c.0.s8 %v587
      %v589 = vlaneseq
      %v590 = vshrl.u32 %v589, 7
      %v591 = vsub.s32 %v588, %v590
      %v592 = vrot.slane %v578, %v591
      %v593 = vcombine.high %v585, 0
      %v594 = vcombine.high %v592, 0
      %v597 = vunpack.c.l.s4 1983009808
      %v598 = vunpack.c.0.s8 %v597
      %v599 = vlaneseq
      %v600 = vshrl.u32 %v599, 7
      %v601 = vsub.s32 %v598, %v600
      %v602 = vrot.slane %v556, %v601
      %v605 = vunpack.c.l.s4 1983009808
      %v606 = vunpack.c.0.s8 %v605
      %v607 = vlaneseq
      %v608 = vshrl.u32 %v607, 7
      %v609 = vsub.s32 %v606, %v608
      %v610 = vrot.slane %v560, %v609
      %v611 = vcombine.low %v602, %v610
      %v612 = vcombine.high %v602, %v610
      %v614 = vunpack.c.l.s4 1934713408
      %v615 = vunpack.c.0.s8 %v614
      %v616 = vlaneseq
      %v617 = vshrl.u32 %v616, 7
      %v618 = vsub.s32 %v615, %v617
      %v619 = vrot.slane %v611, %v618
      %v621 = vunpack.c.l.s4 1934713408
      %v622 = vunpack.c.0.s8 %v621
      %v623 = vlaneseq
      %v624 = vshrl.u32 %v623, 7
      %v625 = vsub.s32 %v622, %v624
      %v626 = vrot.slane %v612, %v625
      %v627 = vcombine.high %v619, 0
      %v628 = vcombine.high %v626, 0
      %v631 = vpack.i.b16 %v619, %v585
      %v633 = vshrl.u32 %v585, 16
      %v634 = vshrl.u32 %v619, 16
      %v635 = vpack.i.b16 %v634, %v633
      %v639 = vpack.i.b16 %v627, %v593
      %v641 = vshrl.u32 %v593, 16
      %v642 = vshrl.u32 %v627, 16
      %v643 = vpack.i.b16 %v642, %v641
      %v647 = vpack.i.b16 %v626, %v592
      %v649 = vshrl.u32 %v592, 16
      %v650 = vshrl.u32 %v626, 16
      %v651 = vpack.i.b16 %v650, %v649
      %v655 = vpack.i.b16 %v628, %v594
      %v657 = vshrl.u32 %v594, 16
      %v658 = vshrl.u32 %v628, 16
      %v659 = vpack.i.b16 %v658, %v657
      %v661 = vcombine.low %v631, %v647
      %v663 = vunpack.c.l.s4 1983009808
      %v664 = vunpack.c.0.s8 %v663
      %v665 = vlaneseq
      %v666 = vshrl.u32 %v665, 7
      %v667 = vsub.s32 %v664, %v666
      %v668 = vrot.slane %v661, %v667
      %v669 = vcombine.low %v639, %v655
      %v671 = vunpack.c.l.s4 1983009808
      %v672 = vunpack.c.0.s8 %v671
      %v673 = vlaneseq
      %v674 = vshrl.u32 %v673, 7
      %v675 = vsub.s32 %v672, %v674
      %v676 = vrot.slane %v669, %v675
      %v677 = vcombine.low %v668, %v676
      %v679 = vunpack.c.l.s4 1934713408
      %v680 = vunpack.c.0.s8 %v679
      %v681 = vlaneseq
      %v682 = vshrl.u32 %v681, 7
      %v683 = vsub.s32 %v680, %v682
      %v684 = vrot.slane %v677, %v683
      %v685 = vcombine.high %v684, 0
      %v686 = vcombine.low %v635, %v651
      %v688 = vunpack.c.l.s4 1983009808
      %v689 = vunpack.c.0.s8 %v688
      %v690 = vlaneseq
      %v691 = vshrl.u32 %v690, 7
      %v692 = vsub.s32 %v689, %v691
      %v693 = vrot.slane %v686, %v692
      %v694 = vcombine.low %v643, %v659
      %v696 = vunpack.c.l.s4 1983009808
      %v697 = vunpack.c.0.s8 %v696
      %v698 = vlaneseq
      %v699 = vshrl.u32 %v698, 7
      %v700 = vsub.s32 %v697, %v699
      %v701 = vrot.slane %v694, %v700
      %v702 = vcombine.low %v693, %v701
      %v704 = vunpack.c.l.s4 1934713408
      %v705 = vunpack.c.0.s8 %v704
      %v706 = vlaneseq
      %v707 = vshrl.u32 %v706, 7
      %v708 = vsub.s32 %v705, %v707
      %v709 = vrot.slane %v702, %v708
      %v710 = vcombine.high %v709, 0
      %v713 = vpack.i.b16 %v709, %v684
      %v714 = vshrl.u32 %v684, 16
      %v715 = vshrl.u32 %v709, 16
      %v716 = vpack.i.b16 %v715, %v714
      %v719 = vpack.i.b16 %v710, %v685
      %v720 = vshrl.u32 %v685, 16
      %v721 = vshrl.u32 %v710, 16
      %v722 = vpack.i.b16 %v721, %v720
      %723 = vrot.lane.b32.xlu0 %v384, 64
      %v724 = vpop.permute.xlu0 %723
      %725 = vrot.lane.b32.xlu0 %v387, 64
      %v726 = vpop.permute.xlu0 %725
      %727 = vrot.lane.b32.xlu0 %v389, 64
      %v728 = vpop.permute.xlu0 %727
      %729 = vrot.lane.b32.xlu0 %v391, 64
      %v730 = vpop.permute.xlu0 %729
      %v733 = vunpack.c.l.s4 1983009808
      %v734 = vunpack.c.0.s8 %v733
      %v735 = vlaneseq
      %v736 = vshrl.u32 %v735, 7
      %v737 = vsub.s32 %v734, %v736
      %v738 = vrot.slane %v724, %v737
      %v741 = vunpack.c.l.s4 1983009808
      %v742 = vunpack.c.0.s8 %v741
      %v743 = vlaneseq
      %v744 = vshrl.u32 %v743, 7
      %v745 = vsub.s32 %v742, %v744
      %v746 = vrot.slane %v728, %v745
      %v747 = vcombine.low %v738, %v746
      %v748 = vcombine.high %v738, %v746
      %v750 = vunpack.c.l.s4 1934713408
      %v751 = vunpack.c.0.s8 %v750
      %v752 = vlaneseq
      %v753 = vshrl.u32 %v752, 7
      %v754 = vsub.s32 %v751, %v753
      %v755 = vrot.slane %v747, %v754
      %v757 = vunpack.c.l.s4 1934713408
      %v758 = vunpack.c.0.s8 %v757
      %v759 = vlaneseq
      %v760 = vshrl.u32 %v759, 7
      %v761 = vsub.s32 %v758, %v760
      %v762 = vrot.slane %v748, %v761
      %v763 = vcombine.high %v755, 0
      %v764 = vcombine.high %v762, 0
      %v767 = vunpack.c.l.s4 1983009808
      %v768 = vunpack.c.0.s8 %v767
      %v769 = vlaneseq
      %v770 = vshrl.u32 %v769, 7
      %v771 = vsub.s32 %v768, %v770
      %v772 = vrot.slane %v726, %v771
      %v775 = vunpack.c.l.s4 1983009808
      %v776 = vunpack.c.0.s8 %v775
      %v777 = vlaneseq
      %v778 = vshrl.u32 %v777, 7
      %v779 = vsub.s32 %v776, %v778
      %v780 = vrot.slane %v730, %v779
      %v781 = vcombine.low %v772, %v780
      %v782 = vcombine.high %v772, %v780
      %v784 = vunpack.c.l.s4 1934713408
      %v785 = vunpack.c.0.s8 %v784
      %v786 = vlaneseq
      %v787 = vshrl.u32 %v786, 7
      %v788 = vsub.s32 %v785, %v787
      %v789 = vrot.slane %v781, %v788
      %v791 = vunpack.c.l.s4 1934713408
      %v792 = vunpack.c.0.s8 %v791
      %v793 = vlaneseq
      %v794 = vshrl.u32 %v793, 7
      %v795 = vsub.s32 %v792, %v794
      %v796 = vrot.slane %v782, %v795
      %v797 = vcombine.high %v789, 0
      %v798 = vcombine.high %v796, 0
      %v801 = vpack.i.b16 %v789, %v755
      %v803 = vshrl.u32 %v755, 16
      %v804 = vshrl.u32 %v789, 16
      %v805 = vpack.i.b16 %v804, %v803
      %v809 = vpack.i.b16 %v797, %v763
      %v811 = vshrl.u32 %v763, 16
      %v812 = vshrl.u32 %v797, 16
      %v813 = vpack.i.b16 %v812, %v811
      %v817 = vpack.i.b16 %v796, %v762
      %v819 = vshrl.u32 %v762, 16
      %v820 = vshrl.u32 %v796, 16
      %v821 = vpack.i.b16 %v820, %v819
      %v825 = vpack.i.b16 %v798, %v764
      %v827 = vshrl.u32 %v764, 16
      %v828 = vshrl.u32 %v798, 16
      %v829 = vpack.i.b16 %v828, %v827
      %v831 = vcombine.low %v801, %v817
      %v833 = vunpack.c.l.s4 1983009808
      %v834 = vunpack.c.0.s8 %v833
      %v835 = vlaneseq
      %v836 = vshrl.u32 %v835, 7
      %v837 = vsub.s32 %v834, %v836
      %v838 = vrot.slane %v831, %v837
      %v839 = vcombine.low %v809, %v825
      %v841 = vunpack.c.l.s4 1983009808
      %v842 = vunpack.c.0.s8 %v841
      %v843 = vlaneseq
      %v844 = vshrl.u32 %v843, 7
      %v845 = vsub.s32 %v842, %v844
      %v846 = vrot.slane %v839, %v845
      %v847 = vcombine.low %v838, %v846
      %v849 = vunpack.c.l.s4 1934713408
      %v850 = vunpack.c.0.s8 %v849
      %v851 = vlaneseq
      %v852 = vshrl.u32 %v851, 7
      %v853 = vsub.s32 %v850, %v852
      %v854 = vrot.slane %v847, %v853
      %v855 = vcombine.high %v854, 0
      %v856 = vcombine.low %v805, %v821
      %v858 = vunpack.c.l.s4 1983009808
      %v859 = vunpack.c.0.s8 %v858
      %v860 = vlaneseq
      %v861 = vshrl.u32 %v860, 7
      %v862 = vsub.s32 %v859, %v861
      %v863 = vrot.slane %v856, %v862
      %v864 = vcombine.low %v813, %v829
      %v866 = vunpack.c.l.s4 1983009808
      %v867 = vunpack.c.0.s8 %v866
      %v868 = vlaneseq
      %v869 = vshrl.u32 %v868, 7
      %v870 = vsub.s32 %v867, %v869
      %v871 = vrot.slane %v864, %v870
      %v872 = vcombine.low %v863, %v871
      %v874 = vunpack.c.l.s4 1934713408
      %v875 = vunpack.c.0.s8 %v874
      %v876 = vlaneseq
      %v877 = vshrl.u32 %v876, 7
      %v878 = vsub.s32 %v875, %v877
      %v879 = vrot.slane %v872, %v878
      %v880 = vcombine.high %v879, 0
      %v883 = vpack.i.b16 %v879, %v854
      %v884 = vshrl.u32 %v854, 16
      %v885 = vshrl.u32 %v879, 16
      %v886 = vpack.i.b16 %v885, %v884
      %v889 = vpack.i.b16 %v880, %v855
      %v890 = vshrl.u32 %v855, 16
      %v891 = vshrl.u32 %v880, 16
      %v892 = vpack.i.b16 %v891, %v890
      %v893 = vld [vmem:[%s310] sm:$0x1]
      %v894 = vld [vmem:[%s4] sm:$0xf]
      %v895 = vld [vmem:[%s4 + $0x4] sm:$0xf]
      %v896 = vld [vmem:[%s4 + $0x8] sm:$0xf]
      %v897 = vld [vmem:[%s4 + $0xc] sm:$0xf]
      %v898 = vld [vmem:[%s5] sm:$0x1]
      %v899 = vld [vmem:[%s6] sm:$0x1]
      %v900 = vld [vmem:[%s7] sm:$0x1]
      %vm901 = vcmask 64512
      %v903 = vsel %vm901, %v543, 0
      %v906 = vsel %vm901, %v713, 0
      %908 = vmatprep.subr.bf16.mxu0 0
      %909 = vmatpush1.bf16.xpose.msra.mxu0 0
      %910 = vmatprep.subr.bf16.mxu0 0
      %911 = vmatpush1.bf16.xpose.msra.mxu0 0
      %912 = vmatprep.subr.bf16.mxu0 0
      %913 = vmatpush1.bf16.xpose.msra.mxu0 0
      %914 = vmatprep.subr.bf16.mxu0 0
      %915 = vmatpush1.bf16.xpose.msra.mxu0 0
      %916 = vmatprep.subr.bf16.mxu0 0
      %917 = vmatpush1.bf16.xpose.msra.mxu0 0
      %918 = vmatprep.subr.bf16.mxu0 0
      %919 = vmatpush1.bf16.xpose.msra.mxu0 0
      %920 = vmatprep.subr.bf16.mxu0 0
      %921 = vmatpush1.bf16.xpose.msra.mxu0 0
      %922 = vmatprep.subr.bf16.mxu0 0
      %923 = vmatpush1.bf16.xpose.msra.mxu0 %v906
      %924 = vmatprep.subr.bf16.mxu0 0
      %925 = vmatpush2.bf16.xpose.msra.mxu0 0
      %926 = vmatprep.subr.bf16.mxu0 0
      %927 = vmatpush2.bf16.xpose.msra.mxu0 0
      %928 = vmatprep.subr.bf16.mxu0 0
      %929 = vmatpush2.bf16.xpose.msra.mxu0 0
      %930 = vmatprep.subr.bf16.mxu0 0
      %931 = vmatpush2.bf16.xpose.msra.mxu0 0
      %932 = vmatprep.subr.bf16.mxu0 0
      %933 = vmatpush2.bf16.xpose.msra.mxu0 0
      %934 = vmatprep.subr.bf16.mxu0 0
      %935 = vmatpush2.bf16.xpose.msra.mxu0 0
      %936 = vmatprep.subr.bf16.mxu0 0
      %937 = vmatpush2.bf16.xpose.msra.mxu0 0
      %938 = vmatprep.subr.bf16.mxu0 0
      %939 = vmatpush2.bf16.xpose.msra.mxu0 0
      %940 = vmatprep.mubr.bf16.mxu0 0
      %941 = vmatmul.mubr.bf16.gmra.mxu0 %v903
      %v942 = vpop.f32.mrf.mxu0
      %v943 = vadd.f32 0.0, %v942
      %v944 = vpop.f32.mrf.mxu0
      %v945 = vpop.f32.mrf.mxu0
      %v946 = vpop.f32.mrf.mxu0
      %947 = vdwg.mxu0
      %v949 = vsel %vm901, %v546, 0
      %v952 = vsel %vm901, %v716, 0
      %954 = vmatprep.subr.bf16.mxu0 0
      %955 = vmatpush1.bf16.xpose.msra.mxu0 0
      %956 = vmatprep.subr.bf16.mxu0 0
      %957 = vmatpush1.bf16.xpose.msra.mxu0 0
      %958 = vmatprep.subr.bf16.mxu0 0
      %959 = vmatpush1.bf16.xpose.msra.mxu0 0
      %960 = vmatprep.subr.bf16.mxu0 0
      %961 = vmatpush1.bf16.xpose.msra.mxu0 0
      %962 = vmatprep.subr.bf16.mxu0 0
      %963 = vmatpush1.bf16.xpose.msra.mxu0 0
      %964 = vmatprep.subr.bf16.mxu0 0
      %965 = vmatpush1.bf16.xpose.msra.mxu0 0
      %966 = vmatprep.subr.bf16.mxu0 0
      %967 = vmatpush1.bf16.xpose.msra.mxu0 0
      %968 = vmatprep.subr.bf16.mxu0 0
      %969 = vmatpush1.bf16.xpose.msra.mxu0 %v952
      %970 = vmatprep.subr.bf16.mxu0 0
      %971 = vmatpush2.bf16.xpose.msra.mxu0 0
      %972 = vmatprep.subr.bf16.mxu0 0
      %973 = vmatpush2.bf16.xpose.msra.mxu0 0
      %974 = vmatprep.subr.bf16.mxu0 0
      %975 = vmatpush2.bf16.xpose.msra.mxu0 0
      %976 = vmatprep.subr.bf16.mxu0 0
      %977 = vmatpush2.bf16.xpose.msra.mxu0 0
      %978 = vmatprep.subr.bf16.mxu0 0
      %979 = vmatpush2.bf16.xpose.msra.mxu0 0
      %980 = vmatprep.subr.bf16.mxu0 0
      %981 = vmatpush2.bf16.xpose.msra.mxu0 0
      %982 = vmatprep.subr.bf16.mxu0 0
      %983 = vmatpush2.bf16.xpose.msra.mxu0 0
      %984 = vmatprep.subr.bf16.mxu0 0
      %985 = vmatpush2.bf16.xpose.msra.mxu0 0
      %986 = vmatprep.mubr.bf16.mxu0 0
      %987 = vmatmul.mubr.bf16.gmra.mxu0 %v949
      %v988 = vpop.f32.mrf.mxu0
      %v989 = vadd.f32 0.0, %v988
      %v990 = vpop.f32.mrf.mxu0
      %v991 = vpop.f32.mrf.mxu0
      %v992 = vpop.f32.mrf.mxu0
      %993 = vdwg.mxu0
      %v995 = vsel %vm901, %v549, 0
      %v998 = vsel %vm901, %v719, 0
      %1000 = vmatprep.subr.bf16.mxu0 0
      %1001 = vmatpush1.bf16.xpose.msra.mxu0 0
      %1002 = vmatprep.subr.bf16.mxu0 0
      %1003 = vmatpush1.bf16.xpose.msra.mxu0 0
      %1004 = vmatprep.subr.bf16.mxu0 0
      %1005 = vmatpush1.bf16.xpose.msra.mxu0 0
      %1006 = vmatprep.subr.bf16.mxu0 0
      %1007 = vmatpush1.bf16.xpose.msra.mxu0 0
      %1008 = vmatprep.subr.bf16.mxu0 0
      %1009 = vmatpush1.bf16.xpose.msra.mxu0 0
      %1010 = vmatprep.subr.bf16.mxu0 0
      %1011 = vmatpush1.bf16.xpose.msra.mxu0 0
      %1012 = vmatprep.subr.bf16.mxu0 0
      %1013 = vmatpush1.bf16.xpose.msra.mxu0 0
      %1014 = vmatprep.subr.bf16.mxu0 0
      %1015 = vmatpush1.bf16.xpose.msra.mxu0 %v998
      %1016 = vmatprep.subr.bf16.mxu0 0
      %1017 = vmatpush2.bf16.xpose.msra.mxu0 0
      %1018 = vmatprep.subr.bf16.mxu0 0
      %1019 = vmatpush2.bf16.xpose.msra.mxu0 0
      %1020 = vmatprep.subr.bf16.mxu0 0
      %1021 = vmatpush2.bf16.xpose.msra.mxu0 0
      %1022 = vmatprep.subr.bf16.mxu0 0
      %1023 = vmatpush2.bf16.xpose.msra.mxu0 0
      %1024 = vmatprep.subr.bf16.mxu0 0
      %1025 = vmatpush2.bf16.xpose.msra.mxu0 0
      %1026 = vmatprep.subr.bf16.mxu0 0
      %1027 = vmatpush2.bf16.xpose.msra.mxu0 0
      %1028 = vmatprep.subr.bf16.mxu0 0
      %1029 = vmatpush2.bf16.xpose.msra.mxu0 0
      %1030 = vmatprep.subr.bf16.mxu0 0
      %1031 = vmatpush2.bf16.xpose.msra.mxu0 0
      %1032 = vmatprep.mubr.bf16.mxu0 0
      %1033 = vmatmul.mubr.bf16.gmra.mxu0 %v995
      %v1034 = vpop.f32.mrf.mxu0
      %v1035 = vadd.f32 0.0, %v1034
      %v1036 = vpop.f32.mrf.mxu0
      %v1037 = vpop.f32.mrf.mxu0
      %v1038 = vpop.f32.mrf.mxu0
      %1039 = vdwg.mxu0
      %v1041 = vsel %vm901, %v552, 0
      %v1044 = vsel %vm901, %v722, 0
      %1046 = vmatprep.subr.bf16.mxu0 0
      %1047 = vmatpush1.bf16.xpose.msra.mxu0 0
      %1048 = vmatprep.subr.bf16.mxu0 0
      %1049 = vmatpush1.bf16.xpose.msra.mxu0 0
      %1050 = vmatprep.subr.bf16.mxu0 0
      %1051 = vmatpush1.bf16.xpose.msra.mxu0 0
      %1052 = vmatprep.subr.bf16.mxu0 0
      %1053 = vmatpush1.bf16.xpose.msra.mxu0 0
      %1054 = vmatprep.subr.bf16.mxu0 0
      %1055 = vmatpush1.bf16.xpose.msra.mxu0 0
      %1056 = vmatprep.subr.bf16.mxu0 0
      %1057 = vmatpush1.bf16.xpose.msra.mxu0 0
      %1058 = vmatprep.subr.bf16.mxu0 0
      %1059 = vmatpush1.bf16.xpose.msra.mxu0 0
      %1060 = vmatprep.subr.bf16.mxu0 0
      %1061 = vmatpush1.bf16.xpose.msra.mxu0 %v1044
      %1062 = vmatprep.subr.bf16.mxu0 0
      %1063 = vmatpush2.bf16.xpose.msra.mxu0 0
      %1064 = vmatprep.subr.bf16.mxu0 0
      %1065 = vmatpush2.bf16.xpose.msra.mxu0 0
      %1066 = vmatprep.subr.bf16.mxu0 0
      %1067 = vmatpush2.bf16.xpose.msra.mxu0 0
      %1068 = vmatprep.subr.bf16.mxu0 0
      %1069 = vmatpush2.bf16.xpose.msra.mxu0 0
      %1070 = vmatprep.subr.bf16.mxu0 0
      %1071 = vmatpush2.bf16.xpose.msra.mxu0 0
      %1072 = vmatprep.subr.bf16.mxu0 0
      %1073 = vmatpush2.bf16.xpose.msra.mxu0 0
      %1074 = vmatprep.subr.bf16.mxu0 0
      %1075 = vmatpush2.bf16.xpose.msra.mxu0 0
      %1076 = vmatprep.subr.bf16.mxu0 0
      %1077 = vmatpush2.bf16.xpose.msra.mxu0 0
      %1078 = vmatprep.mubr.bf16.mxu0 0
      %1079 = vmatmul.mubr.bf16.gmra.mxu0 %v1041
      %v1080 = vpop.f32.mrf.mxu0
      %v1081 = vadd.f32 0.0, %v1080
      %v1082 = vpop.f32.mrf.mxu0
      %v1083 = vpop.f32.mrf.mxu0
      %v1084 = vpop.f32.mrf.mxu0
      %1085 = vdwg.mxu0
      %v1086 = vmul.f32 %v943, 0.35355338
      %v1087 = vmul.f32 %v989, 0.35355338
      %v1088 = vmul.f32 %v1035, 0.35355338
      %v1089 = vmul.f32 %v1081, 0.35355338
      %v1091 = vlaneseq
      %v1092 = vshrl.u32 %v1091, 7
      %v1093 = vsub.s32 0, %v1092
      %v1094 = vrot.slane %v893, %v1093
      %v1096 = vadd.f32 %v1086, %v1094
      %v1097 = vadd.f32 %v1087, %v1094
      %v1098 = vadd.f32 %v1088, %v1094
      %v1099 = vadd.f32 %v1089, %v1094
      %v1100 = vsel %vm901, %v1096, -inf
      %1101 = vmax.xlane.f32.xlu0 %v1100
      %v1102 = vpop.xlane.xlu0 %1101
      %v1103 = vsel %vm901, %v1097, -inf
      %1104 = vmax.xlane.f32.xlu0 %v1103
      %v1105 = vpop.xlane.xlu0 %1104
      %v1106 = vsel %vm901, %v1098, -inf
      %1107 = vmax.xlane.f32.xlu0 %v1106
      %v1108 = vpop.xlane.xlu0 %1107
      %v1109 = vsel %vm901, %v1099, -inf
      %1110 = vmax.xlane.f32.xlu0 %v1109
      %v1111 = vpop.xlane.xlu0 %1110
      %v1112 = vsub.f32 %v1096, %v1102
      %v1113 = vsub.f32 %v1097, %v1105
      %v1114 = vsub.f32 %v1098, %v1108
      %v1115 = vsub.f32 %v1099, %v1111
      %v1116 = vmul.f32 %v1112, 1.442695
      %v1117 = vpow.pop %v1116
      %v1118 = vmul.f32 %v1113, 1.442695
      %v1119 = vpow.pop %v1118
      %v1120 = vmul.f32 %v1114, 1.442695
      %v1121 = vpow.pop %v1120
      %v1122 = vmul.f32 %v1115, 1.442695
      %v1123 = vpow.pop %v1122
      %v1124 = vsel %vm901, %v1117, 0.0
      %1125 = vadd.xlane.f32.xlu0 %v1124
      %v1126 = vpop.xlane.xlu0 %1125
      %v1127 = vsel %vm901, %v1119, 0.0
      %1128 = vadd.xlane.f32.xlu0 %v1127
      %v1129 = vpop.xlane.xlu0 %1128
      %v1130 = vsel %vm901, %v1121, 0.0
      %1131 = vadd.xlane.f32.xlu0 %v1130
      %v1132 = vpop.xlane.xlu0 %1131
      %v1133 = vsel %vm901, %v1123, 0.0
      %1134 = vadd.xlane.f32.xlu0 %v1133
      %v1135 = vpop.xlane.xlu0 %1134
      %v1136 = vrcp.pop %v1126
      %v1137 = vrcp.pop %v1129
      %v1138 = vrcp.pop %v1132
      %v1139 = vrcp.pop %v1135
      %v1140 = vmul.f32 %v1117, %v1136
      %v1141 = vmul.f32 %v1119, %v1137
      %v1142 = vmul.f32 %v1121, %v1138
      %v1143 = vmul.f32 %v1123, %v1139
      %v1144 = vpack.c.bf16 %v1140, %v1140
      %v1145 = vpack.c.bf16 %v1141, %v1141
      %v1146 = vpack.c.bf16 %v1142, %v1142
      %v1147 = vpack.c.bf16 %v1143, %v1143
      %v1149 = vsel %vm901, %v1144, 0
      %vm1151 = vcmask 1043456
      %v1153 = vsel %vm1151, %v883, 0
      %1155 = vmatprep.subr.bf16.mxu0 0
      %1156 = vmatpush1.bf16.msra.mxu0 0
      %1157 = vmatprep.subr.bf16.mxu0 0
      %1158 = vmatpush1.bf16.msra.mxu0 0
      %1159 = vmatprep.subr.bf16.mxu0 0
      %1160 = vmatpush1.bf16.msra.mxu0 0
      %1161 = vmatprep.subr.bf16.mxu0 0
      %1162 = vmatpush1.bf16.msra.mxu0 0
      %1163 = vmatprep.subr.bf16.mxu0 0
      %1164 = vmatpush1.bf16.msra.mxu0 0
      %1165 = vmatprep.subr.bf16.mxu0 0
      %1166 = vmatpush1.bf16.msra.mxu0 0
      %1167 = vmatprep.subr.bf16.mxu0 0
      %1168 = vmatpush1.bf16.msra.mxu0 0
      %1169 = vmatprep.subr.bf16.mxu0 0
      %1170 = vmatpush1.bf16.msra.mxu0 %v1153
      %1171 = vmatprep.subr.bf16.mxu0 0
      %1172 = vmatpush2.bf16.msra.mxu0 0
      %1173 = vmatprep.subr.bf16.mxu0 0
      %1174 = vmatpush2.bf16.msra.mxu0 0
      %1175 = vmatprep.subr.bf16.mxu0 0
      %1176 = vmatpush2.bf16.msra.mxu0 0
      %1177 = vmatprep.subr.bf16.mxu0 0
      %1178 = vmatpush2.bf16.msra.mxu0 0
      %1179 = vmatprep.subr.bf16.mxu0 0
      %1180 = vmatpush2.bf16.msra.mxu0 0
      %1181 = vmatprep.subr.bf16.mxu0 0
      %1182 = vmatpush2.bf16.msra.mxu0 0
      %1183 = vmatprep.subr.bf16.mxu0 0
      %1184 = vmatpush2.bf16.msra.mxu0 0
      %1185 = vmatprep.subr.bf16.mxu0 0
      %1186 = vmatpush2.bf16.msra.mxu0 0
      %1187 = vmatprep.mubr.bf16.mxu0 0
      %1188 = vmatmul.mubr.bf16.gmra.mxu0 %v1149
      %v1189 = vpop.f32.mrf.mxu0
      %v1190 = vadd.f32 0.0, %v1189
      %v1191 = vpop.f32.mrf.mxu0
      %v1192 = vpop.f32.mrf.mxu0
      %v1193 = vpop.f32.mrf.mxu0
      %1194 = vdwg.mxu0
      %v1196 = vsel %vm901, %v1145, 0
      %v1199 = vsel %vm1151, %v886, 0
      %1201 = vmatprep.subr.bf16.mxu0 0
      %1202 = vmatpush1.bf16.msra.mxu0 0
      %1203 = vmatprep.subr.bf16.mxu0 0
      %1204 = vmatpush1.bf16.msra.mxu0 0
      %1205 = vmatprep.subr.bf16.mxu0 0
      %1206 = vmatpush1.bf16.msra.mxu0 0
      %1207 = vmatprep.subr.bf16.mxu0 0
      %1208 = vmatpush1.bf16.msra.mxu0 0
      %1209 = vmatprep.subr.bf16.mxu0 0
      %1210 = vmatpush1.bf16.msra.mxu0 0
      %1211 = vmatprep.subr.bf16.mxu0 0
      %1212 = vmatpush1.bf16.msra.mxu0 0
      %1213 = vmatprep.subr.bf16.mxu0 0
      %1214 = vmatpush1.bf16.msra.mxu0 0
      %1215 = vmatprep.subr.bf16.mxu0 0
      %1216 = vmatpush1.bf16.msra.mxu0 %v1199
      %1217 = vmatprep.subr.bf16.mxu0 0
      %1218 = vmatpush2.bf16.msra.mxu0 0
      %1219 = vmatprep.subr.bf16.mxu0 0
      %1220 = vmatpush2.bf16.msra.mxu0 0
      %1221 = vmatprep.subr.bf16.mxu0 0
      %1222 = vmatpush2.bf16.msra.mxu0 0
      %1223 = vmatprep.subr.bf16.mxu0 0
      %1224 = vmatpush2.bf16.msra.mxu0 0
      %1225 = vmatprep.subr.bf16.mxu0 0
      %1226 = vmatpush2.bf16.msra.mxu0 0
      %1227 = vmatprep.subr.bf16.mxu0 0
      %1228 = vmatpush2.bf16.msra.mxu0 0
      %1229 = vmatprep.subr.bf16.mxu0 0
      %1230 = vmatpush2.bf16.msra.mxu0 0
      %1231 = vmatprep.subr.bf16.mxu0 0
      %1232 = vmatpush2.bf16.msra.mxu0 0
      %1233 = vmatprep.mubr.bf16.mxu0 0
      %1234 = vmatmul.mubr.bf16.gmra.mxu0 %v1196
      %v1235 = vpop.f32.mrf.mxu0
      %v1236 = vadd.f32 0.0, %v1235
      %v1237 = vpop.f32.mrf.mxu0
      %v1238 = vpop.f32.mrf.mxu0
      %v1239 = vpop.f32.mrf.mxu0
      %1240 = vdwg.mxu0
      %v1242 = vsel %vm901, %v1146, 0
      %v1245 = vsel %vm1151, %v889, 0
      %1247 = vmatprep.subr.bf16.mxu0 0
      %1248 = vmatpush1.bf16.msra.mxu0 0
      %1249 = vmatprep.subr.bf16.mxu0 0
      %1250 = vmatpush1.bf16.msra.mxu0 0
      %1251 = vmatprep.subr.bf16.mxu0 0
      %1252 = vmatpush1.bf16.msra.mxu0 0
      %1253 = vmatprep.subr.bf16.mxu0 0
      %1254 = vmatpush1.bf16.msra.mxu0 0
      %1255 = vmatprep.subr.bf16.mxu0 0
      %1256 = vmatpush1.bf16.msra.mxu0 0
      %1257 = vmatprep.subr.bf16.mxu0 0
      %1258 = vmatpush1.bf16.msra.mxu0 0
      %1259 = vmatprep.subr.bf16.mxu0 0
      %1260 = vmatpush1.bf16.msra.mxu0 0
      %1261 = vmatprep.subr.bf16.mxu0 0
      %1262 = vmatpush1.bf16.msra.mxu0 %v1245
      %1263 = vmatprep.subr.bf16.mxu0 0
      %1264 = vmatpush2.bf16.msra.mxu0 0
      %1265 = vmatprep.subr.bf16.mxu0 0
      %1266 = vmatpush2.bf16.msra.mxu0 0
      %1267 = vmatprep.subr.bf16.mxu0 0
      %1268 = vmatpush2.bf16.msra.mxu0 0
      %1269 = vmatprep.subr.bf16.mxu0 0
      %1270 = vmatpush2.bf16.msra.mxu0 0
      %1271 = vmatprep.subr.bf16.mxu0 0
      %1272 = vmatpush2.bf16.msra.mxu0 0
      %1273 = vmatprep.subr.bf16.mxu0 0
      %1274 = vmatpush2.bf16.msra.mxu0 0
      %1275 = vmatprep.subr.bf16.mxu0 0
      %1276 = vmatpush2.bf16.msra.mxu0 0
      %1277 = vmatprep.subr.bf16.mxu0 0
      %1278 = vmatpush2.bf16.msra.mxu0 0
      %1279 = vmatprep.mubr.bf16.mxu0 0
      %1280 = vmatmul.mubr.bf16.gmra.mxu0 %v1242
      %v1281 = vpop.f32.mrf.mxu0
      %v1282 = vadd.f32 0.0, %v1281
      %v1283 = vpop.f32.mrf.mxu0
      %v1284 = vpop.f32.mrf.mxu0
      %v1285 = vpop.f32.mrf.mxu0
      %1286 = vdwg.mxu0
      %v1288 = vsel %vm901, %v1147, 0
      %v1291 = vsel %vm1151, %v892, 0
      %1293 = vmatprep.subr.bf16.mxu0 0
      %1294 = vmatpush1.bf16.msra.mxu0 0
      %1295 = vmatprep.subr.bf16.mxu0 0
      %1296 = vmatpush1.bf16.msra.mxu0 0
      %1297 = vmatprep.subr.bf16.mxu0 0
      %1298 = vmatpush1.bf16.msra.mxu0 0
      %1299 = vmatprep.subr.bf16.mxu0 0
      %1300 = vmatpush1.bf16.msra.mxu0 0
      %1301 = vmatprep.subr.bf16.mxu0 0
      %1302 = vmatpush1.bf16.msra.mxu0 0
      %1303 = vmatprep.subr.bf16.mxu0 0
      %1304 = vmatpush1.bf16.msra.mxu0 0
      %1305 = vmatprep.subr.bf16.mxu0 0
      %1306 = vmatpush1.bf16.msra.mxu0 0
      %1307 = vmatprep.subr.bf16.mxu0 0
      %1308 = vmatpush1.bf16.msra.mxu0 %v1291
      %1309 = vmatprep.subr.bf16.mxu0 0
      %1310 = vmatpush2.bf16.msra.mxu0 0
      %1311 = vmatprep.subr.bf16.mxu0 0
      %1312 = vmatpush2.bf16.msra.mxu0 0
      %1313 = vmatprep.subr.bf16.mxu0 0
      %1314 = vmatpush2.bf16.msra.mxu0 0
      %1315 = vmatprep.subr.bf16.mxu0 0
      %1316 = vmatpush2.bf16.msra.mxu0 0
      %1317 = vmatprep.subr.bf16.mxu0 0
      %1318 = vmatpush2.bf16.msra.mxu0 0
      %1319 = vmatprep.subr.bf16.mxu0 0
      %1320 = vmatpush2.bf16.msra.mxu0 0
      %1321 = vmatprep.subr.bf16.mxu0 0
      %1322 = vmatpush2.bf16.msra.mxu0 0
      %1323 = vmatprep.subr.bf16.mxu0 0
      %1324 = vmatpush2.bf16.msra.mxu0 0
      %1325 = vmatprep.mubr.bf16.mxu0 0
      %1326 = vmatmul.mubr.bf16.gmra.mxu0 %v1288
      %v1327 = vpop.f32.mrf.mxu0
      %v1328 = vadd.f32 0.0, %v1327
      %v1329 = vpop.f32.mrf.mxu0
      %v1330 = vpop.f32.mrf.mxu0
      %v1331 = vpop.f32.mrf.mxu0
      %1332 = vdwg.mxu0
      %v1333 = vcombine.low %v1190, %v1282
      %v1334 = vcombine.high %v1190, %v1282
      %v1336 = vunpack.c.l.s4 1983009808
      %v1337 = vunpack.c.0.s8 %v1336
      %v1338 = vlaneseq
      %v1339 = vshrl.u32 %v1338, 7
      %v1340 = vsub.s32 %v1337, %v1339
      %v1341 = vrot.slane %v1333, %v1340
      %v1343 = vunpack.c.l.s4 1983009808
      %v1344 = vunpack.c.0.s8 %v1343
      %v1345 = vlaneseq
      %v1346 = vshrl.u32 %v1345, 7
      %v1347 = vsub.s32 %v1344, %v1346
      %v1348 = vrot.slane %v1334, %v1347
      %v1349 = vcombine.low %v1236, %v1328
      %v1350 = vcombine.high %v1236, %v1328
      %v1352 = vunpack.c.l.s4 1983009808
      %v1353 = vunpack.c.0.s8 %v1352
      %v1354 = vlaneseq
      %v1355 = vshrl.u32 %v1354, 7
      %v1356 = vsub.s32 %v1353, %v1355
      %v1357 = vrot.slane %v1349, %v1356
      %v1359 = vunpack.c.l.s4 1983009808
      %v1360 = vunpack.c.0.s8 %v1359
      %v1361 = vlaneseq
      %v1362 = vshrl.u32 %v1361, 7
      %v1363 = vsub.s32 %v1360, %v1362
      %v1364 = vrot.slane %v1350, %v1363
      %v1365 = vcombine.low %v1341, %v1357
      %v1366 = vcombine.high %v1341, %v1357
      %v1368 = vunpack.c.l.s4 1934713408
      %v1369 = vunpack.c.0.s8 %v1368
      %v1370 = vlaneseq
      %v1371 = vshrl.u32 %v1370, 7
      %v1372 = vsub.s32 %v1369, %v1371
      %v1373 = vrot.slane %v1365, %v1372
      %v1375 = vunpack.c.l.s4 1934713408
      %v1376 = vunpack.c.0.s8 %v1375
      %v1377 = vlaneseq
      %v1378 = vshrl.u32 %v1377, 7
      %v1379 = vsub.s32 %v1376, %v1378
      %v1380 = vrot.slane %v1366, %v1379
      %v1381 = vcombine.low %v1348, %v1364
      %v1382 = vcombine.high %v1348, %v1364
      %v1384 = vunpack.c.l.s4 1934713408
      %v1385 = vunpack.c.0.s8 %v1384
      %v1386 = vlaneseq
      %v1387 = vshrl.u32 %v1386, 7
      %v1388 = vsub.s32 %v1385, %v1387
      %v1389 = vrot.slane %v1381, %v1388
      %v1391 = vunpack.c.l.s4 1934713408
      %v1392 = vunpack.c.0.s8 %v1391
      %v1393 = vlaneseq
      %v1394 = vshrl.u32 %v1393, 7
      %v1395 = vsub.s32 %v1392, %v1394
      %v1396 = vrot.slane %v1382, %v1395
      %v1397 = vcombine.high %v1373, 0.0
      %v1398 = vcombine.high %v1380, 0.0
      %v1399 = vcombine.high %v1389, 0.0
      %v1400 = vcombine.high %v1396, 0.0
      %v1401 = vcombine.low %v1373, %v1380
      %v1403 = vunpack.c.l.s4 1983009808
      %v1404 = vunpack.c.0.s8 %v1403
      %v1405 = vlaneseq
      %v1406 = vshrl.u32 %v1405, 7
      %v1407 = vsub.s32 %v1404, %v1406
      %v1408 = vrot.slane %v1401, %v1407
      %v1409 = vcombine.low %v1397, %v1398
      %v1411 = vunpack.c.l.s4 1983009808
      %v1412 = vunpack.c.0.s8 %v1411
      %v1413 = vlaneseq
      %v1414 = vshrl.u32 %v1413, 7
      %v1415 = vsub.s32 %v1412, %v1414
      %v1416 = vrot.slane %v1409, %v1415
      %v1417 = vcombine.low %v1389, %v1396
      %v1419 = vunpack.c.l.s4 1983009808
      %v1420 = vunpack.c.0.s8 %v1419
      %v1421 = vlaneseq
      %v1422 = vshrl.u32 %v1421, 7
      %v1423 = vsub.s32 %v1420, %v1422
      %v1424 = vrot.slane %v1417, %v1423
      %v1425 = vcombine.low %v1399, %v1400
      %v1427 = vunpack.c.l.s4 1983009808
      %v1428 = vunpack.c.0.s8 %v1427
      %v1429 = vlaneseq
      %v1430 = vshrl.u32 %v1429, 7
      %v1431 = vsub.s32 %v1428, %v1430
      %v1432 = vrot.slane %v1425, %v1431
      %v1433 = vcombine.low %v1408, %v1416
      %v1434 = vcombine.high %v1408, %v1416
      %v1436 = vunpack.c.l.s4 1934713408
      %v1437 = vunpack.c.0.s8 %v1436
      %v1438 = vlaneseq
      %v1439 = vshrl.u32 %v1438, 7
      %v1440 = vsub.s32 %v1437, %v1439
      %v1441 = vrot.slane %v1433, %v1440
      %v1443 = vunpack.c.l.s4 1934713408
      %v1444 = vunpack.c.0.s8 %v1443
      %v1445 = vlaneseq
      %v1446 = vshrl.u32 %v1445, 7
      %v1447 = vsub.s32 %v1444, %v1446
      %v1448 = vrot.slane %v1434, %v1447
      %v1449 = vcombine.low %v1424, %v1432
      %v1450 = vcombine.high %v1424, %v1432
      %v1452 = vunpack.c.l.s4 1934713408
      %v1453 = vunpack.c.0.s8 %v1452
      %v1454 = vlaneseq
      %v1455 = vshrl.u32 %v1454, 7
      %v1456 = vsub.s32 %v1453, %v1455
      %v1457 = vrot.slane %v1449, %v1456
      %v1459 = vunpack.c.l.s4 1934713408
      %v1460 = vunpack.c.0.s8 %v1459
      %v1461 = vlaneseq
      %v1462 = vshrl.u32 %v1461, 7
      %v1463 = vsub.s32 %v1460, %v1462
      %v1464 = vrot.slane %v1450, %v1463
      %v1465 = vcombine.low %v1441, %v1457
      %v1466 = vcombine.high %v1441, %v1457
      %v1467 = vcombine.low %v1448, %v1464
      %v1468 = vcombine.high %v1448, %v1464
      %1470 = vrot.lane.b32.xlu0 %v1466, 8
      %v1471 = vpop.permute.xlu0 %1470
      %1474 = vrot.lane.b32.xlu0 %v1467, 16
      %v1475 = vpop.permute.xlu0 %1474
      %1478 = vrot.lane.b32.xlu0 %v1468, 24
      %v1479 = vpop.permute.xlu0 %1478
      %v1481 = vsel %vm901, %v1465, %v1471
      %vm1482 = vcmask 130048
      %v1483 = vsel %vm1482, %v1481, %v1475
      %vm1484 = vcmask 195584
      %v1485 = vsel %vm1484, %v1483, %v1479
      %v1486 = vpack.c.bf16 %v1485, %v1485
      %v1488 = vlaneseq
      %v1489 = vshrl.u32 %v1488, 7
      %v1490 = vsub.s32 0, %v1489
      %v1491 = vrot.slane %v898, %v1490
      %v1497 = vunpack.c.l.b16 %v894
      %v1498 = vunpack.c.l.b16 %v895
      %v1499 = vunpack.c.l.b16 %v896
      %v1500 = vunpack.c.l.b16 %v897
      %v1501 = vpack.c.b16 %v1498, %v1497
      %v1502 = vpack.c.b16 %v1500, %v1499
      %v1506 = vsel %vm340, %v1486, 0
      %1508 = vmatprep.subr.bf16.mxu0 0
      %1509 = vmatpush1.bf16.msra.mxu0 0
      %1510 = vmatprep.subr.bf16.mxu0 0
      %1511 = vmatpush1.bf16.msra.mxu0 0
      %1512 = vmatprep.subr.bf16.mxu0 0
      %1513 = vmatpush1.bf16.msra.mxu0 0
      %1514 = vmatprep.subr.bf16.mxu0 0
      %1515 = vmatpush1.bf16.msra.mxu0 0
      %1516 = vmatprep.subr.bf16.mxu0 0
      %1517 = vmatpush1.bf16.msra.mxu0 0
      %1518 = vmatprep.subr.bf16.mxu0 0
      %1519 = vmatpush1.bf16.msra.mxu0 0
      %1520 = vmatprep.subr.bf16.mxu0 0
      %1521 = vmatpush1.bf16.msra.mxu0 %v1502
      %1522 = vmatprep.subr.bf16.mxu0 0
      %1523 = vmatpush1.bf16.msra.mxu0 %v1501
      %1524 = vmatprep.subr.bf16.mxu0 0
      %1525 = vmatpush2.bf16.msra.mxu0 0
      %1526 = vmatprep.subr.bf16.mxu0 0
      %1527 = vmatpush2.bf16.msra.mxu0 0
      %1528 = vmatprep.subr.bf16.mxu0 0
      %1529 = vmatpush2.bf16.msra.mxu0 0
      %1530 = vmatprep.subr.bf16.mxu0 0
      %1531 = vmatpush2.bf16.msra.mxu0 0
      %1532 = vmatprep.subr.bf16.mxu0 0
      %1533 = vmatpush2.bf16.msra.mxu0 0
      %1534 = vmatprep.subr.bf16.mxu0 0
      %1535 = vmatpush2.bf16.msra.mxu0 0
      %1536 = vmatprep.subr.bf16.mxu0 0
      %1537 = vmatpush2.bf16.msra.mxu0 0
      %1538 = vmatprep.subr.bf16.mxu0 0
      %1539 = vmatpush2.bf16.msra.mxu0 0
      %1540 = vmatprep.mubr.bf16.mxu0 0
      %1541 = vmatmul.mubr.bf16.gmra.mxu0 %v1506
      %v1542 = vpop.f32.mrf.mxu0
      %v1543 = vadd.f32 %v1491, %v1542
      %v1544 = vpop.f32.mrf.mxu0
      %v1545 = vpop.f32.mrf.mxu0
      %v1546 = vpop.f32.mrf.mxu0
      %1547 = vdwg.mxu0
      %v1548 = vunpack.c.l.bf16 %v316
      %v1549 = vadd.f32 %v1543, %v1548
      %v1550 = vsel %vm340, %v1549, 0.0
      %1551 = vadd.xlane.f32.xlu0 %v1550
      %v1552 = vpop.xlane.xlu0 %1551
      %v1553 = vrcp.pop 32.0
      %v1554 = vmul.f32 %v1552, %v1553
      %v1555 = vsub.f32 %v1549, %v1554
      %v1556 = vmul.f32 %v1555, %v1555
      %v1557 = vsel %vm340, %v1556, 0.0
      %1558 = vadd.xlane.f32.xlu0 %v1557
      %v1559 = vpop.xlane.xlu0 %1558
      %v1560 = vmul.f32 %v1559, %v1553
      %v1561 = vadd.f32 %v1560, 1e-12
      %v1562 = vrsqrt.pop %v1561
      %v1563 = vmul.f32 %v1555, %v1562
      %v1565 = vlaneseq
      %v1566 = vshrl.u32 %v1565, 7
      %v1567 = vsub.s32 0, %v1566
      %v1568 = vrot.slane %v899, %v1567
      %v1570 = vmul.f32 %v1563, %v1568
      %v1572 = vlaneseq
      %v1573 = vshrl.u32 %v1572, 7
      %v1574 = vsub.s32 0, %v1573
      %v1575 = vrot.slane %v900, %v1574
      %v1577 = vadd.f32 %v1570, %v1575
      %v1578 = vpack.c.bf16 %v1577, %v1577
      %vm1579 = vcmask 257024
      %1580 = vst.msk [vmem:[%s314] sm:$0xf] %vm1579, %v1578
      %p1581 = scmp.lt.s32.totalorder %s19, 1
      %s1582 = scalar_select %p1581, %s19, 1
      %s1583 = smul.addr %s1582, 4
      %s1584 = scalar_lea.vmem %s8, %s1583
      // Predicated region
      $region53: #{sensitive_classifier_forward.7} parent=51 // pred_check
        %p1585 = pneg %p215
      $region54: #{sensitive_classifier_forward.7} parent=51 // pred_check_branch
        %1587 = sbr.rel (%p1585) target = $region56
      $region55: #{sensitive_classifier_forward.7} parent=51 // pred_region
        _
      $region56: #{sensitive_classifier_forward.7} parent=51 // pred_fallthru
        _
    $region52: #{sensitive_classifier_forward.7} parent=5 // pred_fallthru
      _
    %p1588 = scmp.le.s32.totalorder 2, %s14
    // Predicated region
    $region57: #{sensitive_classifier_forward.7} parent=5 // pred_check
      %p1589 = pneg %p1588
    $region58: #{sensitive_classifier_forward.7} parent=5 // pred_check_branch
      %1591 = sbr.rel (%p1589) target = $region60
    $region59: #{sensitive_classifier_forward.7} parent=5 // pred_region
      %s1592 = ssub.s32 %s14, 2
      // Predicated region
      $region61: #{sensitive_classifier_forward.7} parent=59 // pred_check
        %p1593 = pneg %p221
      $region62: #{sensitive_classifier_forward.7} parent=59 // pred_check_branch
        %1595 = sbr.rel (%p1593) target = $region64
      $region63: #{sensitive_classifier_forward.7} parent=59 // pred_region
        %p1596 = scmp.lt.s32.totalorder %s20, 1
        %s1597 = scalar_select %p1596, %s20, 1
        %s1598 = smul.addr %s1597, 4
        %s1599 = scalar_lea.vmem %s8, %s1598
      $region64: #{sensitive_classifier_forward.7} parent=59 // pred_fallthru
        _
    $region60: #{sensitive_classifier_forward.7} parent=5 // pred_fallthru
      _
  $region6: #{sensitive_classifier_forward.7} parent=0 // loop_footer
    %s18 = sadd.s32 1, %s14
  $region7: #{sensitive_classifier_forward.7} parent=0 // loop_footer_branch
    %13 = sbr.rel target = $region3
  $region8: #{sensitive_classifier_forward.7} parent=0 // loop_exit
    _

</llo_original>
